<compile_context>
chip_gen: v6e
topology: v6e:2x2x1
jax: 0.10.0
libtpu: 0.0.40
codegen_flags: <defaults>
</compile_context>

<pallas_src>
import jax
import jax.numpy as jnp
from jax.experimental import pallas as pl
from jax.experimental.pallas import tpu as pltpu

HIDDEN = 32       # hidden_size
DEPTH = 3         # GRU message-passing depth
MAX_NEIGH = 4     # MAX_NUM_NEIGHBORS (padded neighbor lists)


def jtnn_encoder_kernel(
    x_ref,            # (Ep, H)   initial edge features (embedding[wid][edge_node_idx], zero-padded)
    node_emb_ref,     # (Np, H)   node feature embeddings (zero-padded)
    oh_stack_ref,     # (MAX_NEIGH*Ep, Ep) stacked one-hot neighbor gather matrix
    c_node_ref,       # (Np, Ep)  node-level inward-message count matrix
    mask_ref,         # (Ep, 1)   1 for real non-padding edges (row 0 and rows >= E are 0)
    w_x_fused_ref,    # (H, 3H)   [W_r | W_z_x | W_h_x]
    b_fused_ref,      # (1, 3H)   [b_Ur | b_z | b_h]
    ur_ref,           # (H, H)    U_r
    wz_h_ref,         # (H, H)    W_z message half
    wh_h_ref,         # (H, H)    W_h message half
    wo_fused_ref,     # (2H, H)   [wo_x; wo_h] stacked outputNN weight
    bo_ref,           # (1, H)    outputNN bias
    node_vecs_ref,    # out: (Np, H)
    messages_ref,     # out: (Ep, H)
):
    Ep, H = x_ref.shape

    x = x_ref[...]
    oh = oh_stack_ref[...]
    ur = ur_ref[...]
    wz_h = wz_h_ref[...]
    wh_h = wh_h_ref[...]
    mask = mask_ref[...]

    # Loop-invariant x-side projections: ONE fused (Ep,H)@(H,3H) matmul, biases folded.
    xw = jnp.dot(x, w_x_fused_ref[...], preferred_element_type=jnp.float32) + b_fused_ref[...]
    wr_x_b = xw[:, 0:H]          # W_r x + b_Ur
    zx_b = xw[:, H:2 * H]        # W_z_x x + b_z
    hx_b = xw[:, 2 * H:3 * H]    # W_h_x x + b_h

    h = jnp.zeros((Ep, H), jnp.float32)
    for _ in range(DEPTH):                       # static, small depth -> unrolled
        # Fold U_r into the gather RHS: one-hot rows make oh @ (h@Ur) an exact row
        # selection, bit-identical to (oh@h)@Ur.  One (4Ep,Ep)@(Ep,2H) matmul gives
        # both h_nei and h_nei@Ur for every neighbor slot.
        hu = jnp.dot(h, ur, preferred_element_type=jnp.float32)            # (Ep, H)
        rhs = jnp.concatenate([h, hu], axis=1)                             # (Ep, 2H)
        gathered = jnp.dot(oh, rhs, preferred_element_type=jnp.float32)    # (4Ep, 2H)

        # Aligned sublane-block reduction over neighbor slots (VPU adds; no c_mess matmul).
        blk0 = gathered[0:Ep]
        h_nei0 = blk0[:, 0:H]
        sum_h = h_nei0
        sum_gated_h = jax.nn.sigmoid(wr_x_b + blk0[:, H:2 * H]) * h_nei0
        for k in range(1, MAX_NEIGH):
            blk = gathered[k * Ep:(k + 1) * Ep]
            h_nei_k = blk[:, 0:H]
            r_k = jax.nn.sigmoid(wr_x_b + blk[:, H:2 * H])
            sum_h = sum_h + h_nei_k
            sum_gated_h = sum_gated_h + r_k * h_nei_k

        z = jax.nn.sigmoid(zx_b + jnp.dot(sum_h, wz_h, preferred_element_type=jnp.float32))
        pre_h = jnp.tanh(hx_b + jnp.dot(sum_gated_h, wh_h, preferred_element_type=jnp.float32))
        # Mask zeros both the padding-message row 0 (as in GraphGRU.forward) and the
        # rows >= E introduced by sublane padding, so garbage never accumulates there.
        h = ((1.0 - z) * sum_h + z * pre_h) * mask

    messages_ref[...] = h

    # Node-level aggregation of inward messages + fused outputNN (one K=2H matmul, ReLU).
    nei_sum = jnp.dot(c_node_ref[...], h, preferred_element_type=jnp.float32)   # (Np, H)
    cat = jnp.concatenate([node_emb_ref[...], nei_sum], axis=1)                 # (Np, 2H)
    out = jnp.dot(cat, wo_fused_ref[...], preferred_element_type=jnp.float32) + bo_ref[...]
    node_vecs_ref[...] = jnp.maximum(out, 0.0)


def _round_up(v, m):
    return ((v + m - 1) // m) * m


def jtnn_encoder_forward(node_wid_list, edge_node_idx_list, node_message_graph,
                         mess_adjacency_graph, scope, params):
    """Plain-JAX glue (embedding lookup, gather-matrix precompute, root selection)
    around a single Pallas kernel that runs the whole GRU message passing."""
    E = int(mess_adjacency_graph.shape[0])
    N = int(node_wid_list.shape[0])
    H = HIDDEN
    Ep = _round_up(max(E, 8), 8)
    Np = _round_up(max(N, 8), 8)

    # Setup glue (embedding lookup + edge gather), not the hot path.
    node_emb = params["embedding"][node_wid_list].astype(jnp.float32)     # (N, H)
    x = node_emb[edge_node_idx_list].astype(jnp.float32)                   # (E, H)

    x_pad = jnp.pad(x, ((0, Ep - E), (0, 0)))
    node_emb_pad = jnp.pad(node_emb, ((0, Np - N), (0, 0)))
    mess_graph_pad = jnp.pad(mess_adjacency_graph.astype(jnp.int32), ((0, Ep - E), (0, 0)))
    node_graph_pad = jnp.pad(node_message_graph.astype(jnp.int32), ((0, Np - N), (0, 0)))

    # Precomputed gather / count matrices (hoisted out of the kernel's depth loop).
    # Row k*Ep + e of oh_stack is one_hot(mess_graph[e, k], Ep).
    oh_stack = jax.nn.one_hot(mess_graph_pad.T.reshape(-1), Ep, dtype=jnp.float32)  # (4*Ep, Ep)
    c_node = jax.nn.one_hot(node_graph_pad, Ep, dtype=jnp.float32).sum(axis=1)      # (Np, Ep)

    # Padding mask: zero out the GraphGRU padding message (row 0) and padded rows >= E.
    row_ids = jnp.arange(Ep, dtype=jnp.int32)
    mask_pad = ((row_ids != 0) & (row_ids < E)).astype(jnp.float32)[:, None]        # (Ep, 1)

    # Fused loop-invariant x-side GRU weights / biases.
    w_x_fused = jnp.concatenate([params["wr"], params["wz_x"], params["wh_x"]], axis=1)  # (H, 3H)
    b_fused = jnp.concatenate([params["bur"], params["bz"], params["bh"]], axis=1)       # (1, 3H)
    wo_fused = jnp.concatenate([params["wo_x"], params["wo_h"]], axis=0)                 # (2H, H)

    kernel_inputs = (
        x_pad, node_emb_pad, oh_stack, c_node, mask_pad,
        w_x_fused, b_fused,
        params["ur"], params["wz_h"], params["wh_h"],
        wo_fused, params["bo"],
    )

    # Size the VMEM limit from the actual padded buffers (2x for temporaries + headroom),
    # floored at the v6e scoped default and capped at v7x physical VMEM (64 MiB).
    in_bytes = sum(a.size * a.dtype.itemsize for a in kernel_inputs)
    out_bytes = (Np * H + Ep * H) * 4
    vmem_limit = int(min(64 << 20, max(32 << 20, 2 * (in_bytes + out_bytes) + (4 << 20))))

    vmem = pl.BlockSpec(memory_space=pltpu.MemorySpace.VMEM)
    node_vecs_pad, messages_pad = pl.pallas_call(
        jtnn_encoder_kernel,
        out_shape=(jax.ShapeDtypeStruct((Np, H), jnp.float32),
                   jax.ShapeDtypeStruct((Ep, H), jnp.float32)),
        in_specs=[vmem] * len(kernel_inputs),
        out_specs=(vmem, vmem),
        compiler_params=pltpu.CompilerParams(vmem_limit_bytes=vmem_limit),
    )(*kernel_inputs)

    node_vecs = node_vecs_pad[:N]
    messages = messages_pad[:E]

    # Root selection per junction tree (glue).
    starts = jnp.array([s for s, _ in scope], dtype=jnp.int32)
    tree_vecs = node_vecs[starts]
    return tree_vecs, messages


def jtnn_encoder_reference(node_wid_list, edge_node_idx_list, node_message_graph,
                           mess_adjacency_graph, scope, params):
    """Pure-JAX reference mirroring the PyTorch forward (for validation)."""
    node_emb = params["embedding"][node_wid_list]
    x = node_emb[edge_node_idx_list]
    E = x.shape[0]
    mask = (jnp.arange(E)[:, None] != 0).astype(jnp.float32)
    wr_x = x @ params["wr"]
    h = jnp.zeros((E, HIDDEN), jnp.float32)
    for _ in range(DEPTH):
        h_nei = h[mess_adjacency_graph]                       # (E, MAX_NEIGH, H)
        sum_h = h_nei.sum(axis=1)
        z = jax.nn.sigmoid(x @ params["wz_x"] + sum_h @ params["wz_h"] + params["bz"])
        r = jax.nn.sigmoid(wr_x[:, None, :] + h_nei @ params["ur"] + params["bur"])
        sum_gated_h = (r * h_nei).sum(axis=1)
        pre_h = jnp.tanh(x @ params["wh_x"] + sum_gated_h @ params["wh_h"] + params["bh"])
        h = ((1.0 - z) * sum_h + z * pre_h) * mask
    nei_sum = h[node_message_graph].sum(axis=1)
    node_vecs = jnp.maximum(node_emb @ params["wo_x"] + nei_sum @ params["wo_h"] + params["bo"], 0.0)
    starts = jnp.array([s for s, _ in scope], dtype=jnp.int32)
    return node_vecs[starts], h


def make_params(key, vocab_size, hidden):
    ks = jax.random.split(key, 12)
    s = 0.1
    def mat(k, shape):
        return (s * jax.random.normal(k, shape)).astype(jnp.float32)
    # PyTorch nn.Linear(in,out) weight is (out,in); we store transposed (in,out) halves.
    return {
        "embedding": mat(ks[0], (vocab_size, hidden)),
        "wz_x": mat(ks[1], (hidden, hidden)), "wz_h": mat(ks[2], (hidden, hidden)),
        "bz": mat(ks[3], (1, hidden)),
        "wr": mat(ks[4], (hidden, hidden)),
        "ur": mat(ks[5], (hidden, hidden)), "bur": mat(ks[6], (1, hidden)),
        "wh_x": mat(ks[7], (hidden, hidden)), "wh_h": mat(ks[8], (hidden, hidden)),
        "bh": mat(ks[9], (1, hidden)),
        "wo_x": mat(ks[10], (hidden, hidden)), "wo_h": mat(ks[11], (hidden, hidden)),
        "bo": jnp.zeros((1, hidden), jnp.float32),
    }


if __name__ == "__main__":
    key = jax.random.PRNGKey(0)
    k_param, k_wid, k_edge, k_mg, k_ng = jax.random.split(key, 5)

    VOCAB = 20
    N = 8     # num_nodes (2 trees x 4 nodes)
    E = 16    # num_edges (including padding edge 0)

    params = make_params(k_param, VOCAB, HIDDEN)

    node_wid_list = jax.random.randint(k_wid, (N,), 0, VOCAB, dtype=jnp.int32)
    edge_node_idx_list = jax.random.randint(k_edge, (E,), 0, N, dtype=jnp.int32)
    edge_node_idx_list = edge_node_idx_list.at[0].set(0)                    # padding edge
    node_message_graph = jax.random.randint(k_ng, (N, MAX_NEIGH), 0, E, dtype=jnp.int32)
    mess_adjacency_graph = jax.random.randint(k_mg, (E, MAX_NEIGH), 0, E, dtype=jnp.int32)
    mess_adjacency_graph = mess_adjacency_graph.at[0].set(0)                # padding row
    scope = [(0, 4), (4, 4)]                                                # 2 junction trees

    tree_vecs, messages = jtnn_encoder_forward(
        node_wid_list, edge_node_idx_list, node_message_graph,
        mess_adjacency_graph, scope, params)
    jax.block_until_ready((tree_vecs, messages))

    ref_tree, ref_msgs = jtnn_encoder_reference(
        node_wid_list, edge_node_idx_list, node_message_graph,
        mess_adjacency_graph, scope, params)

    assert tree_vecs.shape == (len(scope), HIDDEN)
    assert messages.shape == (E, HIDDEN)
    assert jnp.allclose(tree_vecs, ref_tree, atol=1e-4), "tree_vecs mismatch"
    assert jnp.allclose(messages, ref_msgs, atol=1e-4), "messages mismatch"

    print("KERNEL_OK")
</pallas_src>

<mosaic_0001>
module attributes {stable_mosaic.version = 11 : i64} {
  func.func @jtnn_encoder_kernel(%arg0: memref<16x32xf32, #tpu.memory_space<vmem>>, %arg1: memref<8x32xf32, #tpu.memory_space<vmem>>, %arg2: memref<64x16xf32, #tpu.memory_space<vmem>>, %arg3: memref<8x16xf32, #tpu.memory_space<vmem>>, %arg4: memref<16x1xf32, #tpu.memory_space<vmem>>, %arg5: memref<32x96xf32, #tpu.memory_space<vmem>>, %arg6: memref<1x96xf32, #tpu.memory_space<vmem>>, %arg7: memref<32x32xf32, #tpu.memory_space<vmem>>, %arg8: memref<32x32xf32, #tpu.memory_space<vmem>>, %arg9: memref<32x32xf32, #tpu.memory_space<vmem>>, %arg10: memref<64x32xf32, #tpu.memory_space<vmem>>, %arg11: memref<1x32xf32, #tpu.memory_space<vmem>>, %arg12: memref<8x32xf32, #tpu.memory_space<vmem>>, %arg13: memref<16x32xf32, #tpu.memory_space<vmem>>) attributes {dimension_semantics = [], scalar_prefetch = 0 : i64, scratch_operands = 0 : i64, tpu.core_type = #tpu.core_type<tc>} {
    %c0 = arith.constant 0 : index
    %c0_0 = arith.constant 0 : index
    %0 = vector.load %arg0[%c0, %c0_0] : memref<16x32xf32, #tpu.memory_space<vmem>>, vector<16x32xf32>
    %c0_1 = arith.constant 0 : index
    %c0_2 = arith.constant 0 : index
    %1 = vector.load %arg2[%c0_1, %c0_2] : memref<64x16xf32, #tpu.memory_space<vmem>>, vector<64x16xf32>
    %c0_3 = arith.constant 0 : index
    %c0_4 = arith.constant 0 : index
    %2 = vector.load %arg7[%c0_3, %c0_4] : memref<32x32xf32, #tpu.memory_space<vmem>>, vector<32x32xf32>
    %c0_5 = arith.constant 0 : index
    %c0_6 = arith.constant 0 : index
    %3 = vector.load %arg8[%c0_5, %c0_6] : memref<32x32xf32, #tpu.memory_space<vmem>>, vector<32x32xf32>
    %c0_7 = arith.constant 0 : index
    %c0_8 = arith.constant 0 : index
    %4 = vector.load %arg9[%c0_7, %c0_8] : memref<32x32xf32, #tpu.memory_space<vmem>>, vector<32x32xf32>
    %c0_9 = arith.constant 0 : index
    %c0_10 = arith.constant 0 : index
    %5 = vector.load %arg4[%c0_9, %c0_10] : memref<16x1xf32, #tpu.memory_space<vmem>>, vector<16x1xf32>
    %c0_11 = arith.constant 0 : index
    %c0_12 = arith.constant 0 : index
    %6 = vector.load %arg5[%c0_11, %c0_12] : memref<32x96xf32, #tpu.memory_space<vmem>>, vector<32x96xf32>
    %cst = arith.constant dense<0.000000e+00> : vector<16x96xf32>
    %7 = tpu.matmul %0, %6, %cst {dimension_numbers = #tpu.dot_dimension_numbers<[1], [0], [0], [1], [0, 0, 1, 1], [], []>} : vector<16x32xf32>, vector<32x96xf32>, vector<16x96xf32> -> vector<16x96xf32>
    %c0_13 = arith.constant 0 : index
    %c0_14 = arith.constant 0 : index
    %8 = vector.load %arg6[%c0_13, %c0_14] : memref<1x96xf32, #tpu.memory_space<vmem>>, vector<1x96xf32>
    %9 = vector.broadcast %8 : vector<1x96xf32> to vector<16x96xf32>
    %10 = arith.addf %7, %9 : vector<16x96xf32>
    %11 = vector.extract_strided_slice %10 {offsets = [0, 0], sizes = [16, 32], strides = [1, 1]} : vector<16x96xf32> to vector<16x32xf32>
    %12 = vector.extract_strided_slice %10 {offsets = [0, 32], sizes = [16, 32], strides = [1, 1]} : vector<16x96xf32> to vector<16x32xf32>
    %13 = vector.extract_strided_slice %10 {offsets = [0, 64], sizes = [16, 32], strides = [1, 1]} : vector<16x96xf32> to vector<16x32xf32>
    %cst_15 = arith.constant 0.000000e+00 : f32
    %14 = vector.broadcast %cst_15 : f32 to vector<16x32xf32>
    %cst_16 = arith.constant dense<0.000000e+00> : vector<16x32xf32>
    %15 = tpu.matmul %14, %2, %cst_16 {dimension_numbers = #tpu.dot_dimension_numbers<[1], [0], [0], [1], [0, 0, 1, 1], [], []>} : vector<16x32xf32>, vector<32x32xf32>, vector<16x32xf32> -> vector<16x32xf32>
    %16 = tpu.concatenate %14, %15 in 1 : vector<16x32xf32>, vector<16x32xf32> -> vector<16x64xf32>
    %cst_17 = arith.constant dense<0.000000e+00> : vector<64x64xf32>
    %17 = tpu.matmul %1, %16, %cst_17 {dimension_numbers = #tpu.dot_dimension_numbers<[1], [0], [0], [1], [0, 0, 1, 1], [], []>} : vector<64x16xf32>, vector<16x64xf32>, vector<64x64xf32> -> vector<64x64xf32>
    %18 = vector.extract_strided_slice %17 {offsets = [0, 0], sizes = [16, 64], strides = [1, 1]} : vector<64x64xf32> to vector<16x64xf32>
    %19 = vector.extract_strided_slice %18 {offsets = [0, 0], sizes = [16, 32], strides = [1, 1]} : vector<16x64xf32> to vector<16x32xf32>
    %20 = vector.extract_strided_slice %18 {offsets = [0, 32], sizes = [16, 32], strides = [1, 1]} : vector<16x64xf32> to vector<16x32xf32>
    %21 = arith.addf %11, %20 : vector<16x32xf32>
    %22 = arith.negf %21 : vector<16x32xf32>
    %23 = math.exp %22 : vector<16x32xf32>
    %cst_18 = arith.constant 1.000000e+00 : f32
    %24 = vector.broadcast %cst_18 : f32 to vector<16x32xf32>
    %25 = arith.addf %24, %23 : vector<16x32xf32>
    %26 = arith.divf %24, %25 : vector<16x32xf32>
    %27 = arith.mulf %26, %19 : vector<16x32xf32>
    %28 = vector.extract_strided_slice %17 {offsets = [16, 0], sizes = [16, 64], strides = [1, 1]} : vector<64x64xf32> to vector<16x64xf32>
    %29 = vector.extract_strided_slice %28 {offsets = [0, 0], sizes = [16, 32], strides = [1, 1]} : vector<16x64xf32> to vector<16x32xf32>
    %30 = vector.extract_strided_slice %28 {offsets = [0, 32], sizes = [16, 32], strides = [1, 1]} : vector<16x64xf32> to vector<16x32xf32>
    %31 = arith.addf %11, %30 : vector<16x32xf32>
    %32 = arith.negf %31 : vector<16x32xf32>
    %33 = math.exp %32 : vector<16x32xf32>
    %cst_19 = arith.constant 1.000000e+00 : f32
    %34 = vector.broadcast %cst_19 : f32 to vector<16x32xf32>
    %35 = arith.addf %34, %33 : vector<16x32xf32>
    %36 = arith.divf %34, %35 : vector<16x32xf32>
    %37 = arith.addf %19, %29 : vector<16x32xf32>
    %38 = arith.mulf %36, %29 : vector<16x32xf32>
    %39 = arith.addf %27, %38 : vector<16x32xf32>
    %40 = vector.extract_strided_slice %17 {offsets = [32, 0], sizes = [16, 64], strides = [1, 1]} : vector<64x64xf32> to vector<16x64xf32>
    %41 = vector.extract_strided_slice %40 {offsets = [0, 0], sizes = [16, 32], strides = [1, 1]} : vector<16x64xf32> to vector<16x32xf32>
    %42 = vector.extract_strided_slice %40 {offsets = [0, 32], sizes = [16, 32], strides = [1, 1]} : vector<16x64xf32> to vector<16x32xf32>
    %43 = arith.addf %11, %42 : vector<16x32xf32>
    %44 = arith.negf %43 : vector<16x32xf32>
    %45 = math.exp %44 : vector<16x32xf32>
    %cst_20 = arith.constant 1.000000e+00 : f32
    %46 = vector.broadcast %cst_20 : f32 to vector<16x32xf32>
    %47 = arith.addf %46, %45 : vector<16x32xf32>
    %48 = arith.divf %46, %47 : vector<16x32xf32>
    %49 = arith.addf %37, %41 : vector<16x32xf32>
    %50 = arith.mulf %48, %41 : vector<16x32xf32>
    %51 = arith.addf %39, %50 : vector<16x32xf32>
    %52 = vector.extract_strided_slice %17 {offsets = [48, 0], sizes = [16, 64], strides = [1, 1]} : vector<64x64xf32> to vector<16x64xf32>
    %53 = vector.extract_strided_slice %52 {offsets = [0, 0], sizes = [16, 32], strides = [1, 1]} : vector<16x64xf32> to vector<16x32xf32>
    %54 = vector.extract_strided_slice %52 {offsets = [0, 32], sizes = [16, 32], strides = [1, 1]} : vector<16x64xf32> to vector<16x32xf32>
    %55 = arith.addf %11, %54 : vector<16x32xf32>
    %56 = arith.negf %55 : vector<16x32xf32>
    %57 = math.exp %56 : vector<16x32xf32>
    %cst_21 = arith.constant 1.000000e+00 : f32
    %58 = vector.broadcast %cst_21 : f32 to vector<16x32xf32>
    %59 = arith.addf %58, %57 : vector<16x32xf32>
    %60 = arith.divf %58, %59 : vector<16x32xf32>
    %61 = arith.addf %49, %53 : vector<16x32xf32>
    %62 = arith.mulf %60, %53 : vector<16x32xf32>
    %63 = arith.addf %51, %62 : vector<16x32xf32>
    %cst_22 = arith.constant dense<0.000000e+00> : vector<16x32xf32>
    %64 = tpu.matmul %61, %3, %cst_22 {dimension_numbers = #tpu.dot_dimension_numbers<[1], [0], [0], [1], [0, 0, 1, 1], [], []>} : vector<16x32xf32>, vector<32x32xf32>, vector<16x32xf32> -> vector<16x32xf32>
    %65 = arith.addf %12, %64 : vector<16x32xf32>
    %66 = arith.negf %65 : vector<16x32xf32>
    %67 = math.exp %66 : vector<16x32xf32>
    %cst_23 = arith.constant 1.000000e+00 : f32
    %68 = vector.broadcast %cst_23 : f32 to vector<16x32xf32>
    %69 = arith.addf %68, %67 : vector<16x32xf32>
    %70 = arith.divf %68, %69 : vector<16x32xf32>
    %cst_24 = arith.constant dense<0.000000e+00> : vector<16x32xf32>
    %71 = tpu.matmul %63, %4, %cst_24 {dimension_numbers = #tpu.dot_dimension_numbers<[1], [0], [0], [1], [0, 0, 1, 1], [], []>} : vector<16x32xf32>, vector<32x32xf32>, vector<16x32xf32> -> vector<16x32xf32>
    %72 = arith.addf %13, %71 : vector<16x32xf32>
    %73 = math.tanh %72 : vector<16x32xf32>
    %cst_25 = arith.constant 1.000000e+00 : f32
    %74 = vector.broadcast %cst_25 : f32 to vector<16x32xf32>
    %75 = arith.subf %74, %70 : vector<16x32xf32>
    %76 = arith.mulf %75, %61 : vector<16x32xf32>
    %77 = arith.mulf %70, %73 : vector<16x32xf32>
    %78 = arith.addf %76, %77 : vector<16x32xf32>
    %79 = vector.broadcast %5 : vector<16x1xf32> to vector<16x32xf32>
    %80 = arith.mulf %78, %79 : vector<16x32xf32>
    %cst_26 = arith.constant dense<0.000000e+00> : vector<16x32xf32>
    %81 = tpu.matmul %80, %2, %cst_26 {dimension_numbers = #tpu.dot_dimension_numbers<[1], [0], [0], [1], [0, 0, 1, 1], [], []>} : vector<16x32xf32>, vector<32x32xf32>, vector<16x32xf32> -> vector<16x32xf32>
    %82 = tpu.concatenate %80, %81 in 1 : vector<16x32xf32>, vector<16x32xf32> -> vector<16x64xf32>
    %cst_27 = arith.constant dense<0.000000e+00> : vector<64x64xf32>
    %83 = tpu.matmul %1, %82, %cst_27 {dimension_numbers = #tpu.dot_dimension_numbers<[1], [0], [0], [1], [0, 0, 1, 1], [], []>} : vector<64x16xf32>, vector<16x64xf32>, vector<64x64xf32> -> vector<64x64xf32>
    %84 = vector.extract_strided_slice %83 {offsets = [0, 0], sizes = [16, 64], strides = [1, 1]} : vector<64x64xf32> to vector<16x64xf32>
    %85 = vector.extract_strided_slice %84 {offsets = [0, 0], sizes = [16, 32], strides = [1, 1]} : vector<16x64xf32> to vector<16x32xf32>
    %86 = vector.extract_strided_slice %84 {offsets = [0, 32], sizes = [16, 32], strides = [1, 1]} : vector<16x64xf32> to vector<16x32xf32>
    %87 = arith.addf %11, %86 : vector<16x32xf32>
    %88 = arith.negf %87 : vector<16x32xf32>
    %89 = math.exp %88 : vector<16x32xf32>
    %cst_28 = arith.constant 1.000000e+00 : f32
    %90 = vector.broadcast %cst_28 : f32 to vector<16x32xf32>
    %91 = arith.addf %90, %89 : vector<16x32xf32>
    %92 = arith.divf %90, %91 : vector<16x32xf32>
    %93 = arith.mulf %92, %85 : vector<16x32xf32>
    %94 = vector.extract_strided_slice %83 {offsets = [16, 0], sizes = [16, 64], strides = [1, 1]} : vector<64x64xf32> to vector<16x64xf32>
    %95 = vector.extract_strided_slice %94 {offsets = [0, 0], sizes = [16, 32], strides = [1, 1]} : vector<16x64xf32> to vector<16x32xf32>
    %96 = vector.extract_strided_slice %94 {offsets = [0, 32], sizes = [16, 32], strides = [1, 1]} : vector<16x64xf32> to vector<16x32xf32>
    %97 = arith.addf %11, %96 : vector<16x32xf32>
    %98 = arith.negf %97 : vector<16x32xf32>
    %99 = math.exp %98 : vector<16x32xf32>
    %cst_29 = arith.constant 1.000000e+00 : f32
    %100 = vector.broadcast %cst_29 : f32 to vector<16x32xf32>
    %101 = arith.addf %100, %99 : vector<16x32xf32>
    %102 = arith.divf %100, %101 : vector<16x32xf32>
    %103 = arith.addf %85, %95 : vector<16x32xf32>
    %104 = arith.mulf %102, %95 : vector<16x32xf32>
    %105 = arith.addf %93, %104 : vector<16x32xf32>
    %106 = vector.extract_strided_slice %83 {offsets = [32, 0], sizes = [16, 64], strides = [1, 1]} : vector<64x64xf32> to vector<16x64xf32>
    %107 = vector.extract_strided_slice %106 {offsets = [0, 0], sizes = [16, 32], strides = [1, 1]} : vector<16x64xf32> to vector<16x32xf32>
    %108 = vector.extract_strided_slice %106 {offsets = [0, 32], sizes = [16, 32], strides = [1, 1]} : vector<16x64xf32> to vector<16x32xf32>
    %109 = arith.addf %11, %108 : vector<16x32xf32>
    %110 = arith.negf %109 : vector<16x32xf32>
    %111 = math.exp %110 : vector<16x32xf32>
    %cst_30 = arith.constant 1.000000e+00 : f32
    %112 = vector.broadcast %cst_30 : f32 to vector<16x32xf32>
    %113 = arith.addf %112, %111 : vector<16x32xf32>
    %114 = arith.divf %112, %113 : vector<16x32xf32>
    %115 = arith.addf %103, %107 : vector<16x32xf32>
    %116 = arith.mulf %114, %107 : vector<16x32xf32>
    %117 = arith.addf %105, %116 : vector<16x32xf32>
    %118 = vector.extract_strided_slice %83 {offsets = [48, 0], sizes = [16, 64], strides = [1, 1]} : vector<64x64xf32> to vector<16x64xf32>
    %119 = vector.extract_strided_slice %118 {offsets = [0, 0], sizes = [16, 32], strides = [1, 1]} : vector<16x64xf32> to vector<16x32xf32>
    %120 = vector.extract_strided_slice %118 {offsets = [0, 32], sizes = [16, 32], strides = [1, 1]} : vector<16x64xf32> to vector<16x32xf32>
    %121 = arith.addf %11, %120 : vector<16x32xf32>
    %122 = arith.negf %121 : vector<16x32xf32>
    %123 = math.exp %122 : vector<16x32xf32>
    %cst_31 = arith.constant 1.000000e+00 : f32
    %124 = vector.broadcast %cst_31 : f32 to vector<16x32xf32>
    %125 = arith.addf %124, %123 : vector<16x32xf32>
    %126 = arith.divf %124, %125 : vector<16x32xf32>
    %127 = arith.addf %115, %119 : vector<16x32xf32>
    %128 = arith.mulf %126, %119 : vector<16x32xf32>
    %129 = arith.addf %117, %128 : vector<16x32xf32>
    %cst_32 = arith.constant dense<0.000000e+00> : vector<16x32xf32>
    %130 = tpu.matmul %127, %3, %cst_32 {dimension_numbers = #tpu.dot_dimension_numbers<[1], [0], [0], [1], [0, 0, 1, 1], [], []>} : vector<16x32xf32>, vector<32x32xf32>, vector<16x32xf32> -> vector<16x32xf32>
    %131 = arith.addf %12, %130 : vector<16x32xf32>
    %132 = arith.negf %131 : vector<16x32xf32>
    %133 = math.exp %132 : vector<16x32xf32>
    %cst_33 = arith.constant 1.000000e+00 : f32
    %134 = vector.broadcast %cst_33 : f32 to vector<16x32xf32>
    %135 = arith.addf %134, %133 : vector<16x32xf32>
    %136 = arith.divf %134, %135 : vector<16x32xf32>
    %cst_34 = arith.constant dense<0.000000e+00> : vector<16x32xf32>
    %137 = tpu.matmul %129, %4, %cst_34 {dimension_numbers = #tpu.dot_dimension_numbers<[1], [0], [0], [1], [0, 0, 1, 1], [], []>} : vector<16x32xf32>, vector<32x32xf32>, vector<16x32xf32> -> vector<16x32xf32>
    %138 = arith.addf %13, %137 : vector<16x32xf32>
    %139 = math.tanh %138 : vector<16x32xf32>
    %cst_35 = arith.constant 1.000000e+00 : f32
    %140 = vector.broadcast %cst_35 : f32 to vector<16x32xf32>
    %141 = arith.subf %140, %136 : vector<16x32xf32>
    %142 = arith.mulf %141, %127 : vector<16x32xf32>
    %143 = arith.mulf %136, %139 : vector<16x32xf32>
    %144 = arith.addf %142, %143 : vector<16x32xf32>
    %145 = vector.broadcast %5 : vector<16x1xf32> to vector<16x32xf32>
    %146 = arith.mulf %144, %145 : vector<16x32xf32>
    %cst_36 = arith.constant dense<0.000000e+00> : vector<16x32xf32>
    %147 = tpu.matmul %146, %2, %cst_36 {dimension_numbers = #tpu.dot_dimension_numbers<[1], [0], [0], [1], [0, 0, 1, 1], [], []>} : vector<16x32xf32>, vector<32x32xf32>, vector<16x32xf32> -> vector<16x32xf32>
    %148 = tpu.concatenate %146, %147 in 1 : vector<16x32xf32>, vector<16x32xf32> -> vector<16x64xf32>
    %cst_37 = arith.constant dense<0.000000e+00> : vector<64x64xf32>
    %149 = tpu.matmul %1, %148, %cst_37 {dimension_numbers = #tpu.dot_dimension_numbers<[1], [0], [0], [1], [0, 0, 1, 1], [], []>} : vector<64x16xf32>, vector<16x64xf32>, vector<64x64xf32> -> vector<64x64xf32>
    %150 = vector.extract_strided_slice %149 {offsets = [0, 0], sizes = [16, 64], strides = [1, 1]} : vector<64x64xf32> to vector<16x64xf32>
    %151 = vector.extract_strided_slice %150 {offsets = [0, 0], sizes = [16, 32], strides = [1, 1]} : vector<16x64xf32> to vector<16x32xf32>
    %152 = vector.extract_strided_slice %150 {offsets = [0, 32], sizes = [16, 32], strides = [1, 1]} : vector<16x64xf32> to vector<16x32xf32>
    %153 = arith.addf %11, %152 : vector<16x32xf32>
    %154 = arith.negf %153 : vector<16x32xf32>
    %155 = math.exp %154 : vector<16x32xf32>
    %cst_38 = arith.constant 1.000000e+00 : f32
    %156 = vector.broadcast %cst_38 : f32 to vector<16x32xf32>
    %157 = arith.addf %156, %155 : vector<16x32xf32>
    %158 = arith.divf %156, %157 : vector<16x32xf32>
    %159 = arith.mulf %158, %151 : vector<16x32xf32>
    %160 = vector.extract_strided_slice %149 {offsets = [16, 0], sizes = [16, 64], strides = [1, 1]} : vector<64x64xf32> to vector<16x64xf32>
    %161 = vector.extract_strided_slice %160 {offsets = [0, 0], sizes = [16, 32], strides = [1, 1]} : vector<16x64xf32> to vector<16x32xf32>
    %162 = vector.extract_strided_slice %160 {offsets = [0, 32], sizes = [16, 32], strides = [1, 1]} : vector<16x64xf32> to vector<16x32xf32>
    %163 = arith.addf %11, %162 : vector<16x32xf32>
    %164 = arith.negf %163 : vector<16x32xf32>
    %165 = math.exp %164 : vector<16x32xf32>
    %cst_39 = arith.constant 1.000000e+00 : f32
    %166 = vector.broadcast %cst_39 : f32 to vector<16x32xf32>
    %167 = arith.addf %166, %165 : vector<16x32xf32>
    %168 = arith.divf %166, %167 : vector<16x32xf32>
    %169 = arith.addf %151, %161 : vector<16x32xf32>
    %170 = arith.mulf %168, %161 : vector<16x32xf32>
    %171 = arith.addf %159, %170 : vector<16x32xf32>
    %172 = vector.extract_strided_slice %149 {offsets = [32, 0], sizes = [16, 64], strides = [1, 1]} : vector<64x64xf32> to vector<16x64xf32>
    %173 = vector.extract_strided_slice %172 {offsets = [0, 0], sizes = [16, 32], strides = [1, 1]} : vector<16x64xf32> to vector<16x32xf32>
    %174 = vector.extract_strided_slice %172 {offsets = [0, 32], sizes = [16, 32], strides = [1, 1]} : vector<16x64xf32> to vector<16x32xf32>
    %175 = arith.addf %11, %174 : vector<16x32xf32>
    %176 = arith.negf %175 : vector<16x32xf32>
    %177 = math.exp %176 : vector<16x32xf32>
    %cst_40 = arith.constant 1.000000e+00 : f32
    %178 = vector.broadcast %cst_40 : f32 to vector<16x32xf32>
    %179 = arith.addf %178, %177 : vector<16x32xf32>
    %180 = arith.divf %178, %179 : vector<16x32xf32>
    %181 = arith.addf %169, %173 : vector<16x32xf32>
    %182 = arith.mulf %180, %173 : vector<16x32xf32>
    %183 = arith.addf %171, %182 : vector<16x32xf32>
    %184 = vector.extract_strided_slice %149 {offsets = [48, 0], sizes = [16, 64], strides = [1, 1]} : vector<64x64xf32> to vector<16x64xf32>
    %185 = vector.extract_strided_slice %184 {offsets = [0, 0], sizes = [16, 32], strides = [1, 1]} : vector<16x64xf32> to vector<16x32xf32>
    %186 = vector.extract_strided_slice %184 {offsets = [0, 32], sizes = [16, 32], strides = [1, 1]} : vector<16x64xf32> to vector<16x32xf32>
    %187 = arith.addf %11, %186 : vector<16x32xf32>
    %188 = arith.negf %187 : vector<16x32xf32>
    %189 = math.exp %188 : vector<16x32xf32>
    %cst_41 = arith.constant 1.000000e+00 : f32
    %190 = vector.broadcast %cst_41 : f32 to vector<16x32xf32>
    %191 = arith.addf %190, %189 : vector<16x32xf32>
    %192 = arith.divf %190, %191 : vector<16x32xf32>
    %193 = arith.addf %181, %185 : vector<16x32xf32>
    %194 = arith.mulf %192, %185 : vector<16x32xf32>
    %195 = arith.addf %183, %194 : vector<16x32xf32>
    %cst_42 = arith.constant dense<0.000000e+00> : vector<16x32xf32>
    %196 = tpu.matmul %193, %3, %cst_42 {dimension_numbers = #tpu.dot_dimension_numbers<[1], [0], [0], [1], [0, 0, 1, 1], [], []>} : vector<16x32xf32>, vector<32x32xf32>, vector<16x32xf32> -> vector<16x32xf32>
    %197 = arith.addf %12, %196 : vector<16x32xf32>
    %198 = arith.negf %197 : vector<16x32xf32>
    %199 = math.exp %198 : vector<16x32xf32>
    %cst_43 = arith.constant 1.000000e+00 : f32
    %200 = vector.broadcast %cst_43 : f32 to vector<16x32xf32>
    %201 = arith.addf %200, %199 : vector<16x32xf32>
    %202 = arith.divf %200, %201 : vector<16x32xf32>
    %cst_44 = arith.constant dense<0.000000e+00> : vector<16x32xf32>
    %203 = tpu.matmul %195, %4, %cst_44 {dimension_numbers = #tpu.dot_dimension_numbers<[1], [0], [0], [1], [0, 0, 1, 1], [], []>} : vector<16x32xf32>, vector<32x32xf32>, vector<16x32xf32> -> vector<16x32xf32>
    %204 = arith.addf %13, %203 : vector<16x32xf32>
    %205 = math.tanh %204 : vector<16x32xf32>
    %cst_45 = arith.constant 1.000000e+00 : f32
    %206 = vector.broadcast %cst_45 : f32 to vector<16x32xf32>
    %207 = arith.subf %206, %202 : vector<16x32xf32>
    %208 = arith.mulf %207, %193 : vector<16x32xf32>
    %209 = arith.mulf %202, %205 : vector<16x32xf32>
    %210 = arith.addf %208, %209 : vector<16x32xf32>
    %211 = vector.broadcast %5 : vector<16x1xf32> to vector<16x32xf32>
    %212 = arith.mulf %210, %211 : vector<16x32xf32>
    %c0_46 = arith.constant 0 : index
    %c0_47 = arith.constant 0 : index
    %213 = vector.load %arg13[%c0_46, %c0_47] : memref<16x32xf32, #tpu.memory_space<vmem>>, vector<16x32xf32>
    tpu.vector_store %arg13[%c0_46, %c0_47], %212 {strides = array<i32>} : memref<16x32xf32, #tpu.memory_space<vmem>>, vector<16x32xf32>,
    %c0_48 = arith.constant 0 : index
    %c0_49 = arith.constant 0 : index
    %214 = vector.load %arg3[%c0_48, %c0_49] : memref<8x16xf32, #tpu.memory_space<vmem>>, vector<8x16xf32>
    %cst_50 = arith.constant dense<0.000000e+00> : vector<8x32xf32>
    %215 = tpu.matmul %214, %212, %cst_50 {dimension_numbers = #tpu.dot_dimension_numbers<[1], [0], [0], [1], [0, 0, 1, 1], [], []>} : vector<8x16xf32>, vector<16x32xf32>, vector<8x32xf32> -> vector<8x32xf32>
    %c0_51 = arith.constant 0 : index
    %c0_52 = arith.constant 0 : index
    %216 = vector.load %arg1[%c0_51, %c0_52] : memref<8x32xf32, #tpu.memory_space<vmem>>, vector<8x32xf32>
    %217 = tpu.concatenate %216, %215 in 1 : vector<8x32xf32>, vector<8x32xf32> -> vector<8x64xf32>
    %c0_53 = arith.constant 0 : index
    %c0_54 = arith.constant 0 : index
    %218 = vector.load %arg10[%c0_53, %c0_54] : memref<64x32xf32, #tpu.memory_space<vmem>>, vector<64x32xf32>
    %cst_55 = arith.constant dense<0.000000e+00> : vector<8x32xf32>
    %219 = tpu.matmul %217, %218, %cst_55 {dimension_numbers = #tpu.dot_dimension_numbers<[1], [0], [0], [1], [0, 0, 1, 1], [], []>} : vector<8x64xf32>, vector<64x32xf32>, vector<8x32xf32> -> vector<8x32xf32>
    %c0_56 = arith.constant 0 : index
    %c0_57 = arith.constant 0 : index
    %220 = vector.load %arg11[%c0_56, %c0_57] : memref<1x32xf32, #tpu.memory_space<vmem>>, vector<1x32xf32>
    %221 = vector.broadcast %220 : vector<1x32xf32> to vector<8x32xf32>
    %222 = arith.addf %219, %221 : vector<8x32xf32>
    %cst_58 = arith.constant 0.000000e+00 : f32
    %223 = vector.broadcast %cst_58 : f32 to vector<8x32xf32>
    %224 = arith.maximumf %222, %223 : vector<8x32xf32>
    %c0_59 = arith.constant 0 : index
    %c0_60 = arith.constant 0 : index
    %225 = vector.load %arg12[%c0_59, %c0_60] : memref<8x32xf32, #tpu.memory_space<vmem>>, vector<8x32xf32>
    tpu.vector_store %arg12[%c0_59, %c0_60], %224 {strides = array<i32>} : memref<8x32xf32, #tpu.memory_space<vmem>>, vector<8x32xf32>,
    return
  }
}

</mosaic_0001>

<llo_original>
// kernel: tpu_custom_call.1
$region0: #{tpu_custom_call.1}
  #allocation0 [shape = 'u32[]', space=smem, size = 0x4, offset = 0x4, fixed_abs, tag = 'smem constant byte address 0x4 - core index']
  #allocation1 [shape = 'u32[144,128]{1,0:T(1,128)}', space=vmem, size = 0x12000, scoped, tag = 'internal scratch']
  %s0 = inlined_call_operand.vmem [shape: f32[16,32], index: 0, kind: input, shape index: {}]
  %s1 = inlined_call_operand.hbm [shape: f32[8,32], index: 1, kind: input, shape index: {}]
  %s2 = inlined_call_operand.vmem [shape: f32[64,16], index: 2, kind: input, shape index: {}]
  %s3 = inlined_call_operand.hbm [shape: f32[8,16], index: 3, kind: input, shape index: {}]
  %s4 = inlined_call_operand.vmem [shape: f32[16,1], index: 4, kind: input, shape index: {}]
  %s5 = inlined_call_operand.vmem [shape: f32[32,96], index: 5, kind: input, shape index: {}]
  %s6 = inlined_call_operand.vmem [shape: f32[1,96], index: 6, kind: input, shape index: {}]
  %s7 = inlined_call_operand.vmem [shape: f32[32,32], index: 7, kind: input, shape index: {}]
  %s8 = inlined_call_operand.vmem [shape: f32[32,32], index: 8, kind: input, shape index: {}]
  %s9 = inlined_call_operand.vmem [shape: f32[32,32], index: 9, kind: input, shape index: {}]
  %s10 = inlined_call_operand.vmem [shape: f32[64,32], index: 10, kind: input, shape index: {}]
  %s11 = inlined_call_operand.vmem [shape: f32[1,32], index: 11, kind: input, shape index: {}]
  %s12 = inlined_call_operand.hbm [shape: f32[8,32], index: 12, kind: output, shape index: {0}]
  %s13 = inlined_call_operand.hbm [shape: f32[16,32], index: 13, kind: output, shape index: {1}]
  %14 = xla_tuple %s12, %s13
  %s15 = sld [smem:[#allocation0]]
  $region74: #{tpu_custom_call.1} parent=0
    _
  %s17 = ssub.s32 1, %s15
  %s18 = scalar_select 0, %s17, %s15
  $region1: #{tpu_custom_call.1} parent=0
    #allocation2 [shape = 'u8[4096]{0}', space=vmem, size = 0x1000, scoped, tag = 'input window, operand 1, single buffered']
    #allocation3 [shape = 's32[1]{0}', space=sflag, size = 0x4, scoped, tag = 'scoped memory for tpu_custom_call.1']
    #allocation4 [shape = 's32[1]{0}', space=sflag, size = 0x4, scoped, tag = 'scoped memory for tpu_custom_call.1']
    #allocation5 [shape = 'u8[4096]{0}', space=vmem, size = 0x1000, scoped, tag = 'input window, operand 3, single buffered']
    #allocation6 [shape = 's32[1]{0}', space=sflag, size = 0x4, scoped, tag = 'scoped memory for tpu_custom_call.1']
    #allocation7 [shape = 'u8[4096]{0}', space=vmem, size = 0x1000, scoped, tag = 'output window, operand 0, single buffered']
    #allocation8 [shape = 'u8[8192]{0}', space=vmem, size = 0x2000, scoped, tag = 'output window, operand 1, single buffered']
    #allocation9 [shape = 's32[1]{0}', space=sflag, size = 0x4, scoped, tag = 'scoped memory for tpu_custom_call.1']
    %19 = vsyncpa [#allocation3], 0
    %20 = vsyncpa [#allocation6], 0
    %21 = vsyncpa [#allocation4], 0
    %22 = vsyncpa [#allocation9], 0
    // Predicated region
    $region2: #{tpu_custom_call.1} parent=1 // pred_check
      _
    $region3: #{tpu_custom_call.1} parent=1 // pred_check_branch
      %24 = sbr.rel (0) target = $region5
    $region4: #{tpu_custom_call.1} parent=1 // pred_region
      _
    $region5: #{tpu_custom_call.1} parent=1 // pred_fallthru
      _
    // Predicated region
    $region6: #{tpu_custom_call.1} parent=1 // pred_check
      _
    $region7: #{tpu_custom_call.1} parent=1 // pred_check_branch
      %26 = sbr.rel (0) target = $region9
    $region8: #{tpu_custom_call.1} parent=1 // pred_region
      %s28 = ssub.s32 128, 128
      %29 = vsyncadd [#allocation3], %s28
      %s31 = sshll.u32 [#allocation2], 4
      %s32 = int_to_ptr.vmem [resolvable:$true] %s31
      %34 = dma.hbm_to_vmem [thread:$0]  %s1, 128, %s32, [#allocation3]
    $region9: #{tpu_custom_call.1} parent=1 // pred_fallthru
      _
    // Predicated region
    $region10: #{tpu_custom_call.1} parent=1 // pred_check
      _
    $region11: #{tpu_custom_call.1} parent=1 // pred_check_branch
      %36 = sbr.rel (0) target = $region13
    $region12: #{tpu_custom_call.1} parent=1 // pred_region
      _
    $region13: #{tpu_custom_call.1} parent=1 // pred_fallthru
      _
    // Predicated region
    $region14: #{tpu_custom_call.1} parent=1 // pred_check
      _
    $region15: #{tpu_custom_call.1} parent=1 // pred_check_branch
      %38 = sbr.rel (0) target = $region17
    $region16: #{tpu_custom_call.1} parent=1 // pred_region
      %s40 = ssub.s32 128, 128
      %41 = vsyncadd [#allocation6], %s40
      %s43 = sshll.u32 [#allocation5], 4
      %s44 = int_to_ptr.vmem [resolvable:$true] %s43
      %46 = dma.hbm_to_vmem [thread:$0]  %s3, 128, %s44, [#allocation6]
    $region17: #{tpu_custom_call.1} parent=1 // pred_fallthru
      _
    // Predicated region
    $region18: #{tpu_custom_call.1} parent=1 // pred_check
      _
    $region19: #{tpu_custom_call.1} parent=1 // pred_check_branch
      %48 = sbr.rel (0) target = $region21
    $region20: #{tpu_custom_call.1} parent=1 // pred_region
      _
    $region21: #{tpu_custom_call.1} parent=1 // pred_fallthru
      _
    // Predicated region
    $region22: #{tpu_custom_call.1} parent=1 // pred_check
      _
    $region23: #{tpu_custom_call.1} parent=1 // pred_check_branch
      %50 = sbr.rel (0) target = $region25
    $region24: #{tpu_custom_call.1} parent=1 // pred_region
      _
    $region25: #{tpu_custom_call.1} parent=1 // pred_fallthru
      _
    // Predicated region
    $region26: #{tpu_custom_call.1} parent=1 // pred_check
      _
    $region27: #{tpu_custom_call.1} parent=1 // pred_check_branch
      %52 = sbr.rel (0) target = $region29
    $region28: #{tpu_custom_call.1} parent=1 // pred_region
      _
    $region29: #{tpu_custom_call.1} parent=1 // pred_fallthru
      _
    // Predicated region
    $region30: #{tpu_custom_call.1} parent=1 // pred_check
      _
    $region31: #{tpu_custom_call.1} parent=1 // pred_check_branch
      %54 = sbr.rel (0) target = $region33
    $region32: #{tpu_custom_call.1} parent=1 // pred_region
      _
    $region33: #{tpu_custom_call.1} parent=1 // pred_fallthru
      _
    // Predicated region
    $region34: #{tpu_custom_call.1} parent=1 // pred_check
      _
    $region35: #{tpu_custom_call.1} parent=1 // pred_check_branch
      %56 = sbr.rel (0) target = $region37
    $region36: #{tpu_custom_call.1} parent=1 // pred_region
      _
    $region37: #{tpu_custom_call.1} parent=1 // pred_fallthru
      _
    // Predicated region
    $region38: #{tpu_custom_call.1} parent=1 // pred_check
      _
    $region39: #{tpu_custom_call.1} parent=1 // pred_check_branch
      %58 = sbr.rel (0) target = $region41
    $region40: #{tpu_custom_call.1} parent=1 // pred_region
      _
    $region41: #{tpu_custom_call.1} parent=1 // pred_fallthru
      _
    // Predicated region
    $region42: #{tpu_custom_call.1} parent=1 // pred_check
      _
    $region43: #{tpu_custom_call.1} parent=1 // pred_check_branch
      %60 = sbr.rel (0) target = $region45
    $region44: #{tpu_custom_call.1} parent=1 // pred_region
      _
    $region45: #{tpu_custom_call.1} parent=1 // pred_fallthru
      _
    // Predicated region
    $region46: #{tpu_custom_call.1} parent=1 // pred_check
      _
    $region47: #{tpu_custom_call.1} parent=1 // pred_check_branch
      %62 = sbr.rel (0) target = $region49
    $region48: #{tpu_custom_call.1} parent=1 // pred_region
      _
    $region49: #{tpu_custom_call.1} parent=1 // pred_fallthru
      _
    // Predicated region
    $region50: #{tpu_custom_call.1} parent=1 // pred_check
      _
    $region51: #{tpu_custom_call.1} parent=1 // pred_check_branch
      %64 = sbr.rel (0) target = $region53
    $region52: #{tpu_custom_call.1} parent=1 // pred_region
      %65 = dma.done [#allocation3], 128
    $region53: #{tpu_custom_call.1} parent=1 // pred_fallthru
      _
    // Predicated region
    $region54: #{tpu_custom_call.1} parent=1 // pred_check
      _
    $region55: #{tpu_custom_call.1} parent=1 // pred_check_branch
      %67 = sbr.rel (0) target = $region57
    $region56: #{tpu_custom_call.1} parent=1 // pred_region
      %68 = dma.done [#allocation6], 128
    $region57: #{tpu_custom_call.1} parent=1 // pred_fallthru
      _
    %v69 = vld [vmem:[%s0] sm:$0xff]
    %v70 = vld [vmem:[%s0 + $0x8] sm:$0xff]
    %v71 = vld [vmem:[%s2] sm:$0xff]
    %v72 = vld [vmem:[%s2 + $0x8] sm:$0xff]
    %v73 = vld [vmem:[%s2 + $0x10] sm:$0xff]
    %v74 = vld [vmem:[%s2 + $0x18] sm:$0xff]
    %v75 = vld [vmem:[%s2 + $0x20] sm:$0xff]
    %v76 = vld [vmem:[%s2 + $0x28] sm:$0xff]
    %v77 = vld [vmem:[%s2 + $0x30] sm:$0xff]
    %v78 = vld [vmem:[%s2 + $0x38] sm:$0xff]
    %v79 = vld [vmem:[%s7] sm:$0xff]
    %v80 = vld [vmem:[%s7 + $0x8] sm:$0xff]
    %v81 = vld [vmem:[%s7 + $0x10] sm:$0xff]
    %v82 = vld [vmem:[%s7 + $0x18] sm:$0xff]
    %v83 = vld [vmem:[%s8] sm:$0xff]
    %v84 = vld [vmem:[%s8 + $0x8] sm:$0xff]
    %v85 = vld [vmem:[%s8 + $0x10] sm:$0xff]
    %v86 = vld [vmem:[%s8 + $0x18] sm:$0xff]
    %v87 = vld [vmem:[%s9] sm:$0xff]
    %v88 = vld [vmem:[%s9 + $0x8] sm:$0xff]
    %v89 = vld [vmem:[%s9 + $0x10] sm:$0xff]
    %v90 = vld [vmem:[%s9 + $0x18] sm:$0xff]
    %v91 = vld [vmem:[%s4] sm:$0xff]
    %v92 = vld [vmem:[%s4 + $0x8] sm:$0xff]
    %v93 = vld [vmem:[%s5] sm:$0xff]
    %v94 = vld [vmem:[%s5 + $0x8] sm:$0xff]
    %v95 = vld [vmem:[%s5 + $0x10] sm:$0xff]
    %v96 = vld [vmem:[%s5 + $0x18] sm:$0xff]
    %v97 = vld [vmem:[%s6] sm:$0x1]
    %v99 = vlaneseq
    %v100 = vshrl.u32 %v99, 7
    %v101 = vsub.s32 0, %v100
    %v102 = vrot.slane %v97, %v101
    %vm104 = vcmask 261120
    %v106 = vsel %vm104, %v69, 0
    %v109 = vsel %vm104, %v70, 0
    %111 = vmatprep.subr.mxu0 0.0
    %112 = vmatpush1.msra.mxu0 0.0
    %113 = vmatprep.subr.mxu0 0.0
    %114 = vmatpush1.msra.mxu0 0.0
    %115 = vmatprep.subr.mxu0 0.0
    %116 = vmatpush1.msra.mxu0 0.0
    %117 = vmatprep.subr.mxu0 0.0
    %118 = vmatpush1.msra.mxu0 0.0
    %119 = vmatprep.subr.mxu0 0.0
    %120 = vmatpush1.msra.mxu0 0.0
    %121 = vmatprep.subr.mxu0 0.0
    %122 = vmatpush1.msra.mxu0 0.0
    %123 = vmatprep.subr.mxu0 0.0
    %124 = vmatpush1.msra.mxu0 0.0
    %125 = vmatprep.subr.mxu0 0.0
    %126 = vmatpush1.msra.mxu0 0.0
    %127 = vmatprep.subr.mxu0 0.0
    %128 = vmatpush1.msra.mxu0 0.0
    %129 = vmatprep.subr.mxu0 0.0
    %130 = vmatpush1.msra.mxu0 0.0
    %131 = vmatprep.subr.mxu0 0.0
    %132 = vmatpush1.msra.mxu0 0.0
    %133 = vmatprep.subr.mxu0 0.0
    %134 = vmatpush1.msra.mxu0 0.0
    %135 = vmatprep.subr.mxu0 0.0
    %136 = vmatpush1.msra.mxu0 %v96
    %137 = vmatprep.subr.mxu0 0.0
    %138 = vmatpush1.msra.mxu0 %v95
    %139 = vmatprep.subr.mxu0 0.0
    %140 = vmatpush1.msra.mxu0 %v94
    %141 = vmatprep.subr.mxu0 0.0
    %142 = vmatpush1.msra.mxu0 %v93
    %143 = vmatprep.subr.mxu0 0.0
    %144 = vmatpush2.msra.mxu0 0.0
    %145 = vmatprep.subr.mxu0 0.0
    %146 = vmatpush2.msra.mxu0 0.0
    %147 = vmatprep.subr.mxu0 0.0
    %148 = vmatpush2.msra.mxu0 0.0
    %149 = vmatprep.subr.mxu0 0.0
    %150 = vmatpush2.msra.mxu0 0.0
    %151 = vmatprep.subr.mxu0 0.0
    %152 = vmatpush2.msra.mxu0 0.0
    %153 = vmatprep.subr.mxu0 0.0
    %154 = vmatpush2.msra.mxu0 0.0
    %155 = vmatprep.subr.mxu0 0.0
    %156 = vmatpush2.msra.mxu0 0.0
    %157 = vmatprep.subr.mxu0 0.0
    %158 = vmatpush2.msra.mxu0 0.0
    %159 = vmatprep.subr.mxu0 0.0
    %160 = vmatpush2.msra.mxu0 0.0
    %161 = vmatprep.subr.mxu0 0.0
    %162 = vmatpush2.msra.mxu0 0.0
    %163 = vmatprep.subr.mxu0 0.0
    %164 = vmatpush2.msra.mxu0 0.0
    %165 = vmatprep.subr.mxu0 0.0
    %166 = vmatpush2.msra.mxu0 0.0
    %167 = vmatprep.subr.mxu0 0.0
    %168 = vmatpush2.msra.mxu0 0.0
    %169 = vmatprep.subr.mxu0 0.0
    %170 = vmatpush2.msra.mxu0 0.0
    %171 = vmatprep.subr.mxu0 0.0
    %172 = vmatpush2.msra.mxu0 0.0
    %173 = vmatprep.subr.mxu0 0.0
    %174 = vmatpush2.msra.mxu0 0.0
    %175 = vmatprep.mubr.f32.mxu0 0.0
    %176 = vmatmul.mubr.f32.gmra.mxu0 %v106
    %v177 = vpop.f32.mrf.mxu0
    %v178 = vadd.f32 %v102, %v177
    %v179 = vpop.f32.mrf.mxu0
    %180 = vmatprep.mubr.f32.mxu0 0.0
    %181 = vmatmul.mubr.f32.gmra.mxu0 %v109
    %v182 = vpop.f32.mrf.mxu0
    %v183 = vadd.f32 %v102, %v182
    %v184 = vpop.f32.mrf.mxu0
    %185 = vdwg.mxu0
    %v187 = vsel %vm104, 0.0, 0
    %189 = vmatprep.subr.mxu0 0.0
    %190 = vmatpush1.msra.mxu0 0.0
    %191 = vmatprep.subr.mxu0 0.0
    %192 = vmatpush1.msra.mxu0 0.0
    %193 = vmatprep.subr.mxu0 0.0
    %194 = vmatpush1.msra.mxu0 0.0
    %195 = vmatprep.subr.mxu0 0.0
    %196 = vmatpush1.msra.mxu0 0.0
    %197 = vmatprep.subr.mxu0 0.0
    %198 = vmatpush1.msra.mxu0 0.0
    %199 = vmatprep.subr.mxu0 0.0
    %200 = vmatpush1.msra.mxu0 0.0
    %201 = vmatprep.subr.mxu0 0.0
    %202 = vmatpush1.msra.mxu0 0.0
    %203 = vmatprep.subr.mxu0 0.0
    %204 = vmatpush1.msra.mxu0 0.0
    %205 = vmatprep.subr.mxu0 0.0
    %206 = vmatpush1.msra.mxu0 0.0
    %207 = vmatprep.subr.mxu0 0.0
    %208 = vmatpush1.msra.mxu0 0.0
    %209 = vmatprep.subr.mxu0 0.0
    %210 = vmatpush1.msra.mxu0 0.0
    %211 = vmatprep.subr.mxu0 0.0
    %212 = vmatpush1.msra.mxu0 0.0
    %213 = vmatprep.subr.mxu0 0.0
    %214 = vmatpush1.msra.mxu0 %v82
    %215 = vmatprep.subr.mxu0 0.0
    %216 = vmatpush1.msra.mxu0 %v81
    %217 = vmatprep.subr.mxu0 0.0
    %218 = vmatpush1.msra.mxu0 %v80
    %219 = vmatprep.subr.mxu0 0.0
    %220 = vmatpush1.msra.mxu0 %v79
    %221 = vmatprep.subr.mxu0 0.0
    %222 = vmatpush2.msra.mxu0 0.0
    %223 = vmatprep.subr.mxu0 0.0
    %224 = vmatpush2.msra.mxu0 0.0
    %225 = vmatprep.subr.mxu0 0.0
    %226 = vmatpush2.msra.mxu0 0.0
    %227 = vmatprep.subr.mxu0 0.0
    %228 = vmatpush2.msra.mxu0 0.0
    %229 = vmatprep.subr.mxu0 0.0
    %230 = vmatpush2.msra.mxu0 0.0
    %231 = vmatprep.subr.mxu0 0.0
    %232 = vmatpush2.msra.mxu0 0.0
    %233 = vmatprep.subr.mxu0 0.0
    %234 = vmatpush2.msra.mxu0 0.0
    %235 = vmatprep.subr.mxu0 0.0
    %236 = vmatpush2.msra.mxu0 0.0
    %237 = vmatprep.subr.mxu0 0.0
    %238 = vmatpush2.msra.mxu0 0.0
    %239 = vmatprep.subr.mxu0 0.0
    %240 = vmatpush2.msra.mxu0 0.0
    %241 = vmatprep.subr.mxu0 0.0
    %242 = vmatpush2.msra.mxu0 0.0
    %243 = vmatprep.subr.mxu0 0.0
    %244 = vmatpush2.msra.mxu0 0.0
    %245 = vmatprep.subr.mxu0 0.0
    %246 = vmatpush2.msra.mxu0 0.0
    %247 = vmatprep.subr.mxu0 0.0
    %248 = vmatpush2.msra.mxu0 0.0
    %249 = vmatprep.subr.mxu0 0.0
    %250 = vmatpush2.msra.mxu0 0.0
    %251 = vmatprep.subr.mxu0 0.0
    %252 = vmatpush2.msra.mxu0 0.0
    %253 = vmatprep.mubr.f32.mxu0 0.0
    %254 = vmatmul.mubr.f32.gmra.mxu0 %v187
    %v255 = vpop.f32.mrf.mxu0
    %v256 = vadd.f32 0.0, %v255
    %v257 = vpop.f32.mrf.mxu0
    %258 = vmatprep.mubr.f32.mxu0 0.0
    %259 = vmatmul.mubr.f32.gmra.mxu0 %v187
    %v260 = vpop.f32.mrf.mxu0
    %v261 = vadd.f32 0.0, %v260
    %v262 = vpop.f32.mrf.mxu0
    %263 = vdwg.mxu0
    %266 = vrot.lane.b32.xlu0 %v256, 32
    %v267 = vpop.permute.xlu0 %266
    %268 = vrot.lane.b32.xlu0 %v261, 32
    %v269 = vpop.permute.xlu0 %268
    %v272 = vsel %vm104, 0.0, %v267
    %v273 = vsel %vm104, 0.0, %v269
    %vm274 = vcmask 130048
    %v276 = vsel %vm274, %v71, 0
    %v279 = vsel %vm274, %v72, 0
    %v282 = vsel %vm274, %v73, 0
    %v285 = vsel %vm274, %v74, 0
    %v288 = vsel %vm274, %v75, 0
    %v291 = vsel %vm274, %v76, 0
    %v294 = vsel %vm274, %v77, 0
    %v297 = vsel %vm274, %v78, 0
    %299 = vmatprep.subr.mxu0 0.0
    %300 = vmatpush1.msra.mxu0 0.0
    %301 = vmatprep.subr.mxu0 0.0
    %302 = vmatpush1.msra.mxu0 0.0
    %303 = vmatprep.subr.mxu0 0.0
    %304 = vmatpush1.msra.mxu0 0.0
    %305 = vmatprep.subr.mxu0 0.0
    %306 = vmatpush1.msra.mxu0 0.0
    %307 = vmatprep.subr.mxu0 0.0
    %308 = vmatpush1.msra.mxu0 0.0
    %309 = vmatprep.subr.mxu0 0.0
    %310 = vmatpush1.msra.mxu0 0.0
    %311 = vmatprep.subr.mxu0 0.0
    %312 = vmatpush1.msra.mxu0 0.0
    %313 = vmatprep.subr.mxu0 0.0
    %314 = vmatpush1.msra.mxu0 0.0
    %315 = vmatprep.subr.mxu0 0.0
    %316 = vmatpush1.msra.mxu0 0.0
    %317 = vmatprep.subr.mxu0 0.0
    %318 = vmatpush1.msra.mxu0 0.0
    %319 = vmatprep.subr.mxu0 0.0
    %320 = vmatpush1.msra.mxu0 0.0
    %321 = vmatprep.subr.mxu0 0.0
    %322 = vmatpush1.msra.mxu0 0.0
    %323 = vmatprep.subr.mxu0 0.0
    %324 = vmatpush1.msra.mxu0 0.0
    %325 = vmatprep.subr.mxu0 0.0
    %326 = vmatpush1.msra.mxu0 0.0
    %327 = vmatprep.subr.mxu0 0.0
    %328 = vmatpush1.msra.mxu0 %v273
    %329 = vmatprep.subr.mxu0 0.0
    %330 = vmatpush1.msra.mxu0 %v272
    %331 = vmatprep.subr.mxu0 0.0
    %332 = vmatpush2.msra.mxu0 0.0
    %333 = vmatprep.subr.mxu0 0.0
    %334 = vmatpush2.msra.mxu0 0.0
    %335 = vmatprep.subr.mxu0 0.0
    %336 = vmatpush2.msra.mxu0 0.0
    %337 = vmatprep.subr.mxu0 0.0
    %338 = vmatpush2.msra.mxu0 0.0
    %339 = vmatprep.subr.mxu0 0.0
    %340 = vmatpush2.msra.mxu0 0.0
    %341 = vmatprep.subr.mxu0 0.0
    %342 = vmatpush2.msra.mxu0 0.0
    %343 = vmatprep.subr.mxu0 0.0
    %344 = vmatpush2.msra.mxu0 0.0
    %345 = vmatprep.subr.mxu0 0.0
    %346 = vmatpush2.msra.mxu0 0.0
    %347 = vmatprep.subr.mxu0 0.0
    %348 = vmatpush2.msra.mxu0 0.0
    %349 = vmatprep.subr.mxu0 0.0
    %350 = vmatpush2.msra.mxu0 0.0
    %351 = vmatprep.subr.mxu0 0.0
    %352 = vmatpush2.msra.mxu0 0.0
    %353 = vmatprep.subr.mxu0 0.0
    %354 = vmatpush2.msra.mxu0 0.0
    %355 = vmatprep.subr.mxu0 0.0
    %356 = vmatpush2.msra.mxu0 0.0
    %357 = vmatprep.subr.mxu0 0.0
    %358 = vmatpush2.msra.mxu0 0.0
    %359 = vmatprep.subr.mxu0 0.0
    %360 = vmatpush2.msra.mxu0 0.0
    %361 = vmatprep.subr.mxu0 0.0
    %362 = vmatpush2.msra.mxu0 0.0
    %363 = vmatprep.mubr.f32.mxu0 0.0
    %364 = vmatmul.mubr.f32.gmra.mxu0 %v276
    %v365 = vpop.f32.mrf.mxu0
    %v366 = vadd.f32 0.0, %v365
    %v367 = vpop.f32.mrf.mxu0
    %368 = vmatprep.mubr.f32.mxu0 0.0
    %369 = vmatmul.mubr.f32.gmra.mxu0 %v279
    %v370 = vpop.f32.mrf.mxu0
    %v371 = vadd.f32 0.0, %v370
    %v372 = vpop.f32.mrf.mxu0
    %373 = vmatprep.mubr.f32.mxu0 0.0
    %374 = vmatmul.mubr.f32.gmra.mxu0 %v282
    %v375 = vpop.f32.mrf.mxu0
    %v376 = vadd.f32 0.0, %v375
    %v377 = vpop.f32.mrf.mxu0
    %378 = vmatprep.mubr.f32.mxu0 0.0
    %379 = vmatmul.mubr.f32.gmra.mxu0 %v285
    %v380 = vpop.f32.mrf.mxu0
    %v381 = vadd.f32 0.0, %v380
    %v382 = vpop.f32.mrf.mxu0
    %383 = vmatprep.mubr.f32.mxu0 0.0
    %384 = vmatmul.mubr.f32.gmra.mxu0 %v288
    %v385 = vpop.f32.mrf.mxu0
    %v386 = vadd.f32 0.0, %v385
    %v387 = vpop.f32.mrf.mxu0
    %388 = vmatprep.mubr.f32.mxu0 0.0
    %389 = vmatmul.mubr.f32.gmra.mxu0 %v291
    %v390 = vpop.f32.mrf.mxu0
    %v391 = vadd.f32 0.0, %v390
    %v392 = vpop.f32.mrf.mxu0
    %393 = vmatprep.mubr.f32.mxu0 0.0
    %394 = vmatmul.mubr.f32.gmra.mxu0 %v294
    %v395 = vpop.f32.mrf.mxu0
    %v396 = vadd.f32 0.0, %v395
    %v397 = vpop.f32.mrf.mxu0
    %398 = vmatprep.mubr.f32.mxu0 0.0
    %399 = vmatmul.mubr.f32.gmra.mxu0 %v297
    %v400 = vpop.f32.mrf.mxu0
    %v401 = vadd.f32 0.0, %v400
    %v402 = vpop.f32.mrf.mxu0
    %403 = vdwg.mxu0
    %406 = vrot.lane.b32.xlu0 %v366, 96
    %v407 = vpop.permute.xlu0 %406
    %408 = vrot.lane.b32.xlu0 %v371, 96
    %v409 = vpop.permute.xlu0 %408
    %v412 = vadd.f32 %v178, %v407
    %v413 = vadd.f32 %v183, %v409
    %v414 = vxor.u32 %v412, 2147483648
    %v415 = vxor.u32 %v413, 2147483648
    %v416 = vmul.f32 %v414, 1.442695
    %v417 = vpow.pop %v416
    %v418 = vmul.f32 %v415, 1.442695
    %v419 = vpow.pop %v418
    %v420 = vadd.f32 %v417, 1.0
    %v421 = vadd.f32 %v419, 1.0
    %v422 = vrcp.pop %v420
    %v423 = vmul.f32 1.0, %v422
    %v424 = vrcp.pop %v421
    %v425 = vmul.f32 1.0, %v424
    %v426 = vmul.f32 %v423, %v366
    %v427 = vmul.f32 %v425, %v371
    %430 = vrot.lane.b32.xlu0 %v376, 96
    %v431 = vpop.permute.xlu0 %430
    %432 = vrot.lane.b32.xlu0 %v381, 96
    %v433 = vpop.permute.xlu0 %432
    %v436 = vadd.f32 %v178, %v431
    %v437 = vadd.f32 %v183, %v433
    %v438 = vxor.u32 %v436, 2147483648
    %v439 = vxor.u32 %v437, 2147483648
    %v440 = vmul.f32 %v438, 1.442695
    %v441 = vpow.pop %v440
    %v442 = vmul.f32 %v439, 1.442695
    %v443 = vpow.pop %v442
    %v444 = vadd.f32 %v441, 1.0
    %v445 = vadd.f32 %v443, 1.0
    %v446 = vrcp.pop %v444
    %v447 = vmul.f32 1.0, %v446
    %v448 = vrcp.pop %v445
    %v449 = vmul.f32 1.0, %v448
    %v450 = vadd.f32 %v366, %v376
    %v451 = vadd.f32 %v371, %v381
    %v452 = vmul.f32 %v447, %v376
    %v453 = vmul.f32 %v449, %v381
    %v454 = vadd.f32 %v426, %v452
    %v455 = vadd.f32 %v427, %v453
    %458 = vrot.lane.b32.xlu0 %v386, 96
    %v459 = vpop.permute.xlu0 %458
    %460 = vrot.lane.b32.xlu0 %v391, 96
    %v461 = vpop.permute.xlu0 %460
    %v464 = vadd.f32 %v178, %v459
    %v465 = vadd.f32 %v183, %v461
    %v466 = vxor.u32 %v464, 2147483648
    %v467 = vxor.u32 %v465, 2147483648
    %v468 = vmul.f32 %v466, 1.442695
    %v469 = vpow.pop %v468
    %v470 = vmul.f32 %v467, 1.442695
    %v471 = vpow.pop %v470
    %v472 = vadd.f32 %v469, 1.0
    %v473 = vadd.f32 %v471, 1.0
    %v474 = vrcp.pop %v472
    %v475 = vmul.f32 1.0, %v474
    %v476 = vrcp.pop %v473
    %v477 = vmul.f32 1.0, %v476
    %v478 = vadd.f32 %v450, %v386
    %v479 = vadd.f32 %v451, %v391
    %v480 = vmul.f32 %v475, %v386
    %v481 = vmul.f32 %v477, %v391
    %v482 = vadd.f32 %v454, %v480
    %v483 = vadd.f32 %v455, %v481
    %486 = vrot.lane.b32.xlu0 %v396, 96
    %v487 = vpop.permute.xlu0 %486
    %488 = vrot.lane.b32.xlu0 %v401, 96
    %v489 = vpop.permute.xlu0 %488
    %v492 = vadd.f32 %v178, %v487
    %v493 = vadd.f32 %v183, %v489
    %v494 = vxor.u32 %v492, 2147483648
    %v495 = vxor.u32 %v493, 2147483648
    %v496 = vmul.f32 %v494, 1.442695
    %v497 = vpow.pop %v496
    %v498 = vmul.f32 %v495, 1.442695
    %v499 = vpow.pop %v498
    %v500 = vadd.f32 %v497, 1.0
    %v501 = vadd.f32 %v499, 1.0
    %v502 = vrcp.pop %v500
    %v503 = vmul.f32 1.0, %v502
    %v504 = vrcp.pop %v501
    %v505 = vmul.f32 1.0, %v504
    %v506 = vadd.f32 %v478, %v396
    %v507 = vadd.f32 %v479, %v401
    %v508 = vmul.f32 %v503, %v396
    %v509 = vmul.f32 %v505, %v401
    %v510 = vadd.f32 %v482, %v508
    %v511 = vadd.f32 %v483, %v509
    %v513 = vsel %vm104, %v506, 0
    %v516 = vsel %vm104, %v507, 0
    %518 = vmatprep.subr.mxu0 0.0
    %519 = vmatpush1.msra.mxu0 0.0
    %520 = vmatprep.subr.mxu0 0.0
    %521 = vmatpush1.msra.mxu0 0.0
    %522 = vmatprep.subr.mxu0 0.0
    %523 = vmatpush1.msra.mxu0 0.0
    %524 = vmatprep.subr.mxu0 0.0
    %525 = vmatpush1.msra.mxu0 0.0
    %526 = vmatprep.subr.mxu0 0.0
    %527 = vmatpush1.msra.mxu0 0.0
    %528 = vmatprep.subr.mxu0 0.0
    %529 = vmatpush1.msra.mxu0 0.0
    %530 = vmatprep.subr.mxu0 0.0
    %531 = vmatpush1.msra.mxu0 0.0
    %532 = vmatprep.subr.mxu0 0.0
    %533 = vmatpush1.msra.mxu0 0.0
    %534 = vmatprep.subr.mxu0 0.0
    %535 = vmatpush1.msra.mxu0 0.0
    %536 = vmatprep.subr.mxu0 0.0
    %537 = vmatpush1.msra.mxu0 0.0
    %538 = vmatprep.subr.mxu0 0.0
    %539 = vmatpush1.msra.mxu0 0.0
    %540 = vmatprep.subr.mxu0 0.0
    %541 = vmatpush1.msra.mxu0 0.0
    %542 = vmatprep.subr.mxu0 0.0
    %543 = vmatpush1.msra.mxu0 %v86
    %544 = vmatprep.subr.mxu0 0.0
    %545 = vmatpush1.msra.mxu0 %v85
    %546 = vmatprep.subr.mxu0 0.0
    %547 = vmatpush1.msra.mxu0 %v84
    %548 = vmatprep.subr.mxu0 0.0
    %549 = vmatpush1.msra.mxu0 %v83
    %550 = vmatprep.subr.mxu0 0.0
    %551 = vmatpush2.msra.mxu0 0.0
    %552 = vmatprep.subr.mxu0 0.0
    %553 = vmatpush2.msra.mxu0 0.0
    %554 = vmatprep.subr.mxu0 0.0
    %555 = vmatpush2.msra.mxu0 0.0
    %556 = vmatprep.subr.mxu0 0.0
    %557 = vmatpush2.msra.mxu0 0.0
    %558 = vmatprep.subr.mxu0 0.0
    %559 = vmatpush2.msra.mxu0 0.0
    %560 = vmatprep.subr.mxu0 0.0
    %561 = vmatpush2.msra.mxu0 0.0
    %562 = vmatprep.subr.mxu0 0.0
    %563 = vmatpush2.msra.mxu0 0.0
    %564 = vmatprep.subr.mxu0 0.0
    %565 = vmatpush2.msra.mxu0 0.0
    %566 = vmatprep.subr.mxu0 0.0
    %567 = vmatpush2.msra.mxu0 0.0
    %568 = vmatprep.subr.mxu0 0.0
    %569 = vmatpush2.msra.mxu0 0.0
    %570 = vmatprep.subr.mxu0 0.0
    %571 = vmatpush2.msra.mxu0 0.0
    %572 = vmatprep.subr.mxu0 0.0
    %573 = vmatpush2.msra.mxu0 0.0
    %574 = vmatprep.subr.mxu0 0.0
    %575 = vmatpush2.msra.mxu0 0.0
    %576 = vmatprep.subr.mxu0 0.0
    %577 = vmatpush2.msra.mxu0 0.0
    %578 = vmatprep.subr.mxu0 0.0
    %579 = vmatpush2.msra.mxu0 0.0
    %580 = vmatprep.subr.mxu0 0.0
    %581 = vmatpush2.msra.mxu0 0.0
    %582 = vmatprep.mubr.f32.mxu0 0.0
    %583 = vmatmul.mubr.f32.gmra.mxu0 %v513
    %v584 = vpop.f32.mrf.mxu0
    %v585 = vadd.f32 0.0, %v584
    %v586 = vpop.f32.mrf.mxu0
    %587 = vmatprep.mubr.f32.mxu0 0.0
    %588 = vmatmul.mubr.f32.gmra.mxu0 %v516
    %v589 = vpop.f32.mrf.mxu0
    %v590 = vadd.f32 0.0, %v589
    %v591 = vpop.f32.mrf.mxu0
    %592 = vdwg.mxu0
    %595 = vrot.lane.b32.xlu0 %v585, 32
    %v596 = vpop.permute.xlu0 %595
    %597 = vrot.lane.b32.xlu0 %v590, 32
    %v598 = vpop.permute.xlu0 %597
    %v601 = vadd.f32 %v178, %v596
    %v602 = vadd.f32 %v183, %v598
    %v603 = vxor.u32 %v601, 2147483648
    %v604 = vxor.u32 %v602, 2147483648
    %v605 = vmul.f32 %v603, 1.442695
    %v606 = vpow.pop %v605
    %v607 = vmul.f32 %v604, 1.442695
    %v608 = vpow.pop %v607
    %v609 = vadd.f32 %v606, 1.0
    %v610 = vadd.f32 %v608, 1.0
    %v611 = vrcp.pop %v609
    %v612 = vmul.f32 1.0, %v611
    %v613 = vrcp.pop %v610
    %v614 = vmul.f32 1.0, %v613
    %v616 = vsel %vm104, %v510, 0
    %v619 = vsel %vm104, %v511, 0
    %621 = vmatprep.subr.mxu0 0.0
    %622 = vmatpush1.msra.mxu0 0.0
    %623 = vmatprep.subr.mxu0 0.0
    %624 = vmatpush1.msra.mxu0 0.0
    %625 = vmatprep.subr.mxu0 0.0
    %626 = vmatpush1.msra.mxu0 0.0
    %627 = vmatprep.subr.mxu0 0.0
    %628 = vmatpush1.msra.mxu0 0.0
    %629 = vmatprep.subr.mxu0 0.0
    %630 = vmatpush1.msra.mxu0 0.0
    %631 = vmatprep.subr.mxu0 0.0
    %632 = vmatpush1.msra.mxu0 0.0
    %633 = vmatprep.subr.mxu0 0.0
    %634 = vmatpush1.msra.mxu0 0.0
    %635 = vmatprep.subr.mxu0 0.0
    %636 = vmatpush1.msra.mxu0 0.0
    %637 = vmatprep.subr.mxu0 0.0
    %638 = vmatpush1.msra.mxu0 0.0
    %639 = vmatprep.subr.mxu0 0.0
    %640 = vmatpush1.msra.mxu0 0.0
    %641 = vmatprep.subr.mxu0 0.0
    %642 = vmatpush1.msra.mxu0 0.0
    %643 = vmatprep.subr.mxu0 0.0
    %644 = vmatpush1.msra.mxu0 0.0
    %645 = vmatprep.subr.mxu0 0.0
    %646 = vmatpush1.msra.mxu0 %v90
    %647 = vmatprep.subr.mxu0 0.0
    %648 = vmatpush1.msra.mxu0 %v89
    %649 = vmatprep.subr.mxu0 0.0
    %650 = vmatpush1.msra.mxu0 %v88
    %651 = vmatprep.subr.mxu0 0.0
    %652 = vmatpush1.msra.mxu0 %v87
    %653 = vmatprep.subr.mxu0 0.0
    %654 = vmatpush2.msra.mxu0 0.0
    %655 = vmatprep.subr.mxu0 0.0
    %656 = vmatpush2.msra.mxu0 0.0
    %657 = vmatprep.subr.mxu0 0.0
    %658 = vmatpush2.msra.mxu0 0.0
    %659 = vmatprep.subr.mxu0 0.0
    %660 = vmatpush2.msra.mxu0 0.0
    %661 = vmatprep.subr.mxu0 0.0
    %662 = vmatpush2.msra.mxu0 0.0
    %663 = vmatprep.subr.mxu0 0.0
    %664 = vmatpush2.msra.mxu0 0.0
    %665 = vmatprep.subr.mxu0 0.0
    %666 = vmatpush2.msra.mxu0 0.0
    %667 = vmatprep.subr.mxu0 0.0
    %668 = vmatpush2.msra.mxu0 0.0
    %669 = vmatprep.subr.mxu0 0.0
    %670 = vmatpush2.msra.mxu0 0.0
    %671 = vmatprep.subr.mxu0 0.0
    %672 = vmatpush2.msra.mxu0 0.0
    %673 = vmatprep.subr.mxu0 0.0
    %674 = vmatpush2.msra.mxu0 0.0
    %675 = vmatprep.subr.mxu0 0.0
    %676 = vmatpush2.msra.mxu0 0.0
    %677 = vmatprep.subr.mxu0 0.0
    %678 = vmatpush2.msra.mxu0 0.0
    %679 = vmatprep.subr.mxu0 0.0
    %680 = vmatpush2.msra.mxu0 0.0
    %681 = vmatprep.subr.mxu0 0.0
    %682 = vmatpush2.msra.mxu0 0.0
    %683 = vmatprep.subr.mxu0 0.0
    %684 = vmatpush2.msra.mxu0 0.0
    %685 = vmatprep.mubr.f32.mxu0 0.0
    %686 = vmatmul.mubr.f32.gmra.mxu0 %v616
    %v687 = vpop.f32.mrf.mxu0
    %v688 = vadd.f32 0.0, %v687
    %v689 = vpop.f32.mrf.mxu0
    %690 = vmatprep.mubr.f32.mxu0 0.0
    %691 = vmatmul.mubr.f32.gmra.mxu0 %v619
    %v692 = vpop.f32.mrf.mxu0
    %v693 = vadd.f32 0.0, %v692
    %v694 = vpop.f32.mrf.mxu0
    %695 = vdwg.mxu0
    %698 = vrot.lane.b32.xlu0 %v688, 64
    %v699 = vpop.permute.xlu0 %698
    %700 = vrot.lane.b32.xlu0 %v693, 64
    %v701 = vpop.permute.xlu0 %700
    %v704 = vadd.f32 %v178, %v699
    %v705 = vadd.f32 %v183, %v701
    %v706 = vtanh.pop %v704
    %v707 = vtanh.pop %v705
    %v708 = vsub.f32 1.0, %v612
    %v709 = vsub.f32 1.0, %v614
    %710 = vrot.lane.b32.xlu0 %v506, 32
    %v711 = vpop.permute.xlu0 %710
    %712 = vrot.lane.b32.xlu0 %v507, 32
    %v713 = vpop.permute.xlu0 %712
    %v716 = vmul.f32 %v708, %v711
    %v717 = vmul.f32 %v709, %v713
    %720 = vrot.lane.b32.xlu0 %v706, 96
    %v721 = vpop.permute.xlu0 %720
    %722 = vrot.lane.b32.xlu0 %v707, 96
    %v723 = vpop.permute.xlu0 %722
    %v726 = vmul.f32 %v612, %v721
    %v727 = vmul.f32 %v614, %v723
    %v728 = vadd.f32 %v716, %v726
    %v729 = vadd.f32 %v717, %v727
    %731 = vset.pattern.permute.xlu0 0
    %732 = vperm.xlu0 %731, %v91
    %v733 = vpop.permute.xlu0 %732
    %736 = vset.pattern.permute.xlu0 0
    %737 = vperm.xlu0 %736, %v92
    %v738 = vpop.permute.xlu0 %737
    %v740 = vmul.f32 %v728, %v733
    %v741 = vmul.f32 %v729, %v738
    %744 = vrot.lane.b32.xlu0 %v740, 96
    %v745 = vpop.permute.xlu0 %744
    %746 = vrot.lane.b32.xlu0 %v741, 96
    %v747 = vpop.permute.xlu0 %746
    %v748 = vsel %vm104, %v745, 0
    %v750 = vsel %vm104, %v747, 0
    %752 = vmatprep.subr.mxu0 0.0
    %753 = vmatpush1.msra.mxu0 0.0
    %754 = vmatprep.subr.mxu0 0.0
    %755 = vmatpush1.msra.mxu0 0.0
    %756 = vmatprep.subr.mxu0 0.0
    %757 = vmatpush1.msra.mxu0 0.0
    %758 = vmatprep.subr.mxu0 0.0
    %759 = vmatpush1.msra.mxu0 0.0
    %760 = vmatprep.subr.mxu0 0.0
    %761 = vmatpush1.msra.mxu0 0.0
    %762 = vmatprep.subr.mxu0 0.0
    %763 = vmatpush1.msra.mxu0 0.0
    %764 = vmatprep.subr.mxu0 0.0
    %765 = vmatpush1.msra.mxu0 0.0
    %766 = vmatprep.subr.mxu0 0.0
    %767 = vmatpush1.msra.mxu0 0.0
    %768 = vmatprep.subr.mxu0 0.0
    %769 = vmatpush1.msra.mxu0 0.0
    %770 = vmatprep.subr.mxu0 0.0
    %771 = vmatpush1.msra.mxu0 0.0
    %772 = vmatprep.subr.mxu0 0.0
    %773 = vmatpush1.msra.mxu0 0.0
    %774 = vmatprep.subr.mxu0 0.0
    %775 = vmatpush1.msra.mxu0 0.0
    %776 = vmatprep.subr.mxu0 0.0
    %777 = vmatpush1.msra.mxu0 %v82
    %778 = vmatprep.subr.mxu0 0.0
    %779 = vmatpush1.msra.mxu0 %v81
    %780 = vmatprep.subr.mxu0 0.0
    %781 = vmatpush1.msra.mxu0 %v80
    %782 = vmatprep.subr.mxu0 0.0
    %783 = vmatpush1.msra.mxu0 %v79
    %784 = vmatprep.subr.mxu0 0.0
    %785 = vmatpush2.msra.mxu0 0.0
    %786 = vmatprep.subr.mxu0 0.0
    %787 = vmatpush2.msra.mxu0 0.0
    %788 = vmatprep.subr.mxu0 0.0
    %789 = vmatpush2.msra.mxu0 0.0
    %790 = vmatprep.subr.mxu0 0.0
    %791 = vmatpush2.msra.mxu0 0.0
    %792 = vmatprep.subr.mxu0 0.0
    %793 = vmatpush2.msra.mxu0 0.0
    %794 = vmatprep.subr.mxu0 0.0
    %795 = vmatpush2.msra.mxu0 0.0
    %796 = vmatprep.subr.mxu0 0.0
    %797 = vmatpush2.msra.mxu0 0.0
    %798 = vmatprep.subr.mxu0 0.0
    %799 = vmatpush2.msra.mxu0 0.0
    %800 = vmatprep.subr.mxu0 0.0
    %801 = vmatpush2.msra.mxu0 0.0
    %802 = vmatprep.subr.mxu0 0.0
    %803 = vmatpush2.msra.mxu0 0.0
    %804 = vmatprep.subr.mxu0 0.0
    %805 = vmatpush2.msra.mxu0 0.0
    %806 = vmatprep.subr.mxu0 0.0
    %807 = vmatpush2.msra.mxu0 0.0
    %808 = vmatprep.subr.mxu0 0.0
    %809 = vmatpush2.msra.mxu0 0.0
    %810 = vmatprep.subr.mxu0 0.0
    %811 = vmatpush2.msra.mxu0 0.0
    %812 = vmatprep.subr.mxu0 0.0
    %813 = vmatpush2.msra.mxu0 0.0
    %814 = vmatprep.subr.mxu0 0.0
    %815 = vmatpush2.msra.mxu0 0.0
    %816 = vmatprep.mubr.f32.mxu0 0.0
    %817 = vmatmul.mubr.f32.gmra.mxu0 %v748
    %v818 = vpop.f32.mrf.mxu0
    %v819 = vadd.f32 0.0, %v818
    %v820 = vpop.f32.mrf.mxu0
    %821 = vmatprep.mubr.f32.mxu0 0.0
    %822 = vmatmul.mubr.f32.gmra.mxu0 %v750
    %v823 = vpop.f32.mrf.mxu0
    %v824 = vadd.f32 0.0, %v823
    %v825 = vpop.f32.mrf.mxu0
    %826 = vdwg.mxu0
    %831 = vrot.lane.b32.xlu0 %v819, 32
    %v832 = vpop.permute.xlu0 %831
    %833 = vrot.lane.b32.xlu0 %v824, 32
    %v834 = vpop.permute.xlu0 %833
    %v837 = vsel %vm104, %v745, %v832
    %v838 = vsel %vm104, %v747, %v834
    %839 = vmatprep.subr.mxu0 0.0
    %840 = vmatpush1.msra.mxu0 0.0
    %841 = vmatprep.subr.mxu0 0.0
    %842 = vmatpush1.msra.mxu0 0.0
    %843 = vmatprep.subr.mxu0 0.0
    %844 = vmatpush1.msra.mxu0 0.0
    %845 = vmatprep.subr.mxu0 0.0
    %846 = vmatpush1.msra.mxu0 0.0
    %847 = vmatprep.subr.mxu0 0.0
    %848 = vmatpush1.msra.mxu0 0.0
    %849 = vmatprep.subr.mxu0 0.0
    %850 = vmatpush1.msra.mxu0 0.0
    %851 = vmatprep.subr.mxu0 0.0
    %852 = vmatpush1.msra.mxu0 0.0
    %853 = vmatprep.subr.mxu0 0.0
    %854 = vmatpush1.msra.mxu0 0.0
    %855 = vmatprep.subr.mxu0 0.0
    %856 = vmatpush1.msra.mxu0 0.0
    %857 = vmatprep.subr.mxu0 0.0
    %858 = vmatpush1.msra.mxu0 0.0
    %859 = vmatprep.subr.mxu0 0.0
    %860 = vmatpush1.msra.mxu0 0.0
    %861 = vmatprep.subr.mxu0 0.0
    %862 = vmatpush1.msra.mxu0 0.0
    %863 = vmatprep.subr.mxu0 0.0
    %864 = vmatpush1.msra.mxu0 0.0
    %865 = vmatprep.subr.mxu0 0.0
    %866 = vmatpush1.msra.mxu0 0.0
    %867 = vmatprep.subr.mxu0 0.0
    %868 = vmatpush1.msra.mxu0 %v838
    %869 = vmatprep.subr.mxu0 0.0
    %870 = vmatpush1.msra.mxu0 %v837
    %871 = vmatprep.subr.mxu0 0.0
    %872 = vmatpush2.msra.mxu0 0.0
    %873 = vmatprep.subr.mxu0 0.0
    %874 = vmatpush2.msra.mxu0 0.0
    %875 = vmatprep.subr.mxu0 0.0
    %876 = vmatpush2.msra.mxu0 0.0
    %877 = vmatprep.subr.mxu0 0.0
    %878 = vmatpush2.msra.mxu0 0.0
    %879 = vmatprep.subr.mxu0 0.0
    %880 = vmatpush2.msra.mxu0 0.0
    %881 = vmatprep.subr.mxu0 0.0
    %882 = vmatpush2.msra.mxu0 0.0
    %883 = vmatprep.subr.mxu0 0.0
    %884 = vmatpush2.msra.mxu0 0.0
    %885 = vmatprep.subr.mxu0 0.0
    %886 = vmatpush2.msra.mxu0 0.0
    %887 = vmatprep.subr.mxu0 0.0
    %888 = vmatpush2.msra.mxu0 0.0
    %889 = vmatprep.subr.mxu0 0.0
    %890 = vmatpush2.msra.mxu0 0.0
    %891 = vmatprep.subr.mxu0 0.0
    %892 = vmatpush2.msra.mxu0 0.0
    %893 = vmatprep.subr.mxu0 0.0
    %894 = vmatpush2.msra.mxu0 0.0
    %895 = vmatprep.subr.mxu0 0.0
    %896 = vmatpush2.msra.mxu0 0.0
    %897 = vmatprep.subr.mxu0 0.0
    %898 = vmatpush2.msra.mxu0 0.0
    %899 = vmatprep.subr.mxu0 0.0
    %900 = vmatpush2.msra.mxu0 0.0
    %901 = vmatprep.subr.mxu0 0.0
    %902 = vmatpush2.msra.mxu0 0.0
    %903 = vmatprep.mubr.f32.mxu0 0.0
    %904 = vmatmul.mubr.f32.gmra.mxu0 %v276
    %v905 = vpop.f32.mrf.mxu0
    %v906 = vadd.f32 0.0, %v905
    %v907 = vpop.f32.mrf.mxu0
    %908 = vmatprep.mubr.f32.mxu0 0.0
    %909 = vmatmul.mubr.f32.gmra.mxu0 %v279
    %v910 = vpop.f32.mrf.mxu0
    %v911 = vadd.f32 0.0, %v910
    %v912 = vpop.f32.mrf.mxu0
    %913 = vmatprep.mubr.f32.mxu0 0.0
    %914 = vmatmul.mubr.f32.gmra.mxu0 %v282
    %v915 = vpop.f32.mrf.mxu0
    %v916 = vadd.f32 0.0, %v915
    %v917 = vpop.f32.mrf.mxu0
    %918 = vmatprep.mubr.f32.mxu0 0.0
    %919 = vmatmul.mubr.f32.gmra.mxu0 %v285
    %v920 = vpop.f32.mrf.mxu0
    %v921 = vadd.f32 0.0, %v920
    %v922 = vpop.f32.mrf.mxu0
    %923 = vmatprep.mubr.f32.mxu0 0.0
    %924 = vmatmul.mubr.f32.gmra.mxu0 %v288
    %v925 = vpop.f32.mrf.mxu0
    %v926 = vadd.f32 0.0, %v925
    %v927 = vpop.f32.mrf.mxu0
    %928 = vmatprep.mubr.f32.mxu0 0.0
    %929 = vmatmul.mubr.f32.gmra.mxu0 %v291
    %v930 = vpop.f32.mrf.mxu0
    %v931 = vadd.f32 0.0, %v930
    %v932 = vpop.f32.mrf.mxu0
    %933 = vmatprep.mubr.f32.mxu0 0.0
    %934 = vmatmul.mubr.f32.gmra.mxu0 %v294
    %v935 = vpop.f32.mrf.mxu0
    %v936 = vadd.f32 0.0, %v935
    %v937 = vpop.f32.mrf.mxu0
    %938 = vmatprep.mubr.f32.mxu0 0.0
    %939 = vmatmul.mubr.f32.gmra.mxu0 %v297
    %v940 = vpop.f32.mrf.mxu0
    %v941 = vadd.f32 0.0, %v940
    %v942 = vpop.f32.mrf.mxu0
    %943 = vdwg.mxu0
    %946 = vrot.lane.b32.xlu0 %v906, 96
    %v947 = vpop.permute.xlu0 %946
    %948 = vrot.lane.b32.xlu0 %v911, 96
    %v949 = vpop.permute.xlu0 %948
    %v952 = vadd.f32 %v178, %v947
    %v953 = vadd.f32 %v183, %v949
    %v954 = vxor.u32 %v952, 2147483648
    %v955 = vxor.u32 %v953, 2147483648
    %v956 = vmul.f32 %v954, 1.442695
    %v957 = vpow.pop %v956
    %v958 = vmul.f32 %v955, 1.442695
    %v959 = vpow.pop %v958
    %v960 = vadd.f32 %v957, 1.0
    %v961 = vadd.f32 %v959, 1.0
    %v962 = vrcp.pop %v960
    %v963 = vmul.f32 1.0, %v962
    %v964 = vrcp.pop %v961
    %v965 = vmul.f32 1.0, %v964
    %v966 = vmul.f32 %v963, %v906
    %v967 = vmul.f32 %v965, %v911
    %970 = vrot.lane.b32.xlu0 %v916, 96
    %v971 = vpop.permute.xlu0 %970
    %972 = vrot.lane.b32.xlu0 %v921, 96
    %v973 = vpop.permute.xlu0 %972
    %v976 = vadd.f32 %v178, %v971
    %v977 = vadd.f32 %v183, %v973
    %v978 = vxor.u32 %v976, 2147483648
    %v979 = vxor.u32 %v977, 2147483648
    %v980 = vmul.f32 %v978, 1.442695
    %v981 = vpow.pop %v980
    %v982 = vmul.f32 %v979, 1.442695
    %v983 = vpow.pop %v982
    %v984 = vadd.f32 %v981, 1.0
    %v985 = vadd.f32 %v983, 1.0
    %v986 = vrcp.pop %v984
    %v987 = vmul.f32 1.0, %v986
    %v988 = vrcp.pop %v985
    %v989 = vmul.f32 1.0, %v988
    %v990 = vadd.f32 %v906, %v916
    %v991 = vadd.f32 %v911, %v921
    %v992 = vmul.f32 %v987, %v916
    %v993 = vmul.f32 %v989, %v921
    %v994 = vadd.f32 %v966, %v992
    %v995 = vadd.f32 %v967, %v993
    %998 = vrot.lane.b32.xlu0 %v926, 96
    %v999 = vpop.permute.xlu0 %998
    %1000 = vrot.lane.b32.xlu0 %v931, 96
    %v1001 = vpop.permute.xlu0 %1000
    %v1004 = vadd.f32 %v178, %v999
    %v1005 = vadd.f32 %v183, %v1001
    %v1006 = vxor.u32 %v1004, 2147483648
    %v1007 = vxor.u32 %v1005, 2147483648
    %v1008 = vmul.f32 %v1006, 1.442695
    %v1009 = vpow.pop %v1008
    %v1010 = vmul.f32 %v1007, 1.442695
    %v1011 = vpow.pop %v1010
    %v1012 = vadd.f32 %v1009, 1.0
    %v1013 = vadd.f32 %v1011, 1.0
    %v1014 = vrcp.pop %v1012
    %v1015 = vmul.f32 1.0, %v1014
    %v1016 = vrcp.pop %v1013
    %v1017 = vmul.f32 1.0, %v1016
    %v1018 = vadd.f32 %v990, %v926
    %v1019 = vadd.f32 %v991, %v931
    %v1020 = vmul.f32 %v1015, %v926
    %v1021 = vmul.f32 %v1017, %v931
    %v1022 = vadd.f32 %v994, %v1020
    %v1023 = vadd.f32 %v995, %v1021
    %1026 = vrot.lane.b32.xlu0 %v936, 96
    %v1027 = vpop.permute.xlu0 %1026
    %1028 = vrot.lane.b32.xlu0 %v941, 96
    %v1029 = vpop.permute.xlu0 %1028
    %v1032 = vadd.f32 %v178, %v1027
    %v1033 = vadd.f32 %v183, %v1029
    %v1034 = vxor.u32 %v1032, 2147483648
    %v1035 = vxor.u32 %v1033, 2147483648
    %v1036 = vmul.f32 %v1034, 1.442695
    %v1037 = vpow.pop %v1036
    %v1038 = vmul.f32 %v1035, 1.442695
    %v1039 = vpow.pop %v1038
    %v1040 = vadd.f32 %v1037, 1.0
    %v1041 = vadd.f32 %v1039, 1.0
    %v1042 = vrcp.pop %v1040
    %v1043 = vmul.f32 1.0, %v1042
    %v1044 = vrcp.pop %v1041
    %v1045 = vmul.f32 1.0, %v1044
    %v1046 = vadd.f32 %v1018, %v936
    %v1047 = vadd.f32 %v1019, %v941
    %v1048 = vmul.f32 %v1043, %v936
    %v1049 = vmul.f32 %v1045, %v941
    %v1050 = vadd.f32 %v1022, %v1048
    %v1051 = vadd.f32 %v1023, %v1049
    %v1053 = vsel %vm104, %v1046, 0
    %v1056 = vsel %vm104, %v1047, 0
    %1058 = vmatprep.subr.mxu0 0.0
    %1059 = vmatpush1.msra.mxu0 0.0
    %1060 = vmatprep.subr.mxu0 0.0
    %1061 = vmatpush1.msra.mxu0 0.0
    %1062 = vmatprep.subr.mxu0 0.0
    %1063 = vmatpush1.msra.mxu0 0.0
    %1064 = vmatprep.subr.mxu0 0.0
    %1065 = vmatpush1.msra.mxu0 0.0
    %1066 = vmatprep.subr.mxu0 0.0
    %1067 = vmatpush1.msra.mxu0 0.0
    %1068 = vmatprep.subr.mxu0 0.0
    %1069 = vmatpush1.msra.mxu0 0.0
    %1070 = vmatprep.subr.mxu0 0.0
    %1071 = vmatpush1.msra.mxu0 0.0
    %1072 = vmatprep.subr.mxu0 0.0
    %1073 = vmatpush1.msra.mxu0 0.0
    %1074 = vmatprep.subr.mxu0 0.0
    %1075 = vmatpush1.msra.mxu0 0.0
    %1076 = vmatprep.subr.mxu0 0.0
    %1077 = vmatpush1.msra.mxu0 0.0
    %1078 = vmatprep.subr.mxu0 0.0
    %1079 = vmatpush1.msra.mxu0 0.0
    %1080 = vmatprep.subr.mxu0 0.0
    %1081 = vmatpush1.msra.mxu0 0.0
    %1082 = vmatprep.subr.mxu0 0.0
    %1083 = vmatpush1.msra.mxu0 %v86
    %1084 = vmatprep.subr.mxu0 0.0
    %1085 = vmatpush1.msra.mxu0 %v85
    %1086 = vmatprep.subr.mxu0 0.0
    %1087 = vmatpush1.msra.mxu0 %v84
    %1088 = vmatprep.subr.mxu0 0.0
    %1089 = vmatpush1.msra.mxu0 %v83
    %1090 = vmatprep.subr.mxu0 0.0
    %1091 = vmatpush2.msra.mxu0 0.0
    %1092 = vmatprep.subr.mxu0 0.0
    %1093 = vmatpush2.msra.mxu0 0.0
    %1094 = vmatprep.subr.mxu0 0.0
    %1095 = vmatpush2.msra.mxu0 0.0
    %1096 = vmatprep.subr.mxu0 0.0
    %1097 = vmatpush2.msra.mxu0 0.0
    %1098 = vmatprep.subr.mxu0 0.0
    %1099 = vmatpush2.msra.mxu0 0.0
    %1100 = vmatprep.subr.mxu0 0.0
    %1101 = vmatpush2.msra.mxu0 0.0
    %1102 = vmatprep.subr.mxu0 0.0
    %1103 = vmatpush2.msra.mxu0 0.0
    %1104 = vmatprep.subr.mxu0 0.0
    %1105 = vmatpush2.msra.mxu0 0.0
    %1106 = vmatprep.subr.mxu0 0.0
    %1107 = vmatpush2.msra.mxu0 0.0
    %1108 = vmatprep.subr.mxu0 0.0
    %1109 = vmatpush2.msra.mxu0 0.0
    %1110 = vmatprep.subr.mxu0 0.0
    %1111 = vmatpush2.msra.mxu0 0.0
    %1112 = vmatprep.subr.mxu0 0.0
    %1113 = vmatpush2.msra.mxu0 0.0
    %1114 = vmatprep.subr.mxu0 0.0
    %1115 = vmatpush2.msra.mxu0 0.0
    %1116 = vmatprep.subr.mxu0 0.0
    %1117 = vmatpush2.msra.mxu0 0.0
    %1118 = vmatprep.subr.mxu0 0.0
    %1119 = vmatpush2.msra.mxu0 0.0
    %1120 = vmatprep.subr.mxu0 0.0
    %1121 = vmatpush2.msra.mxu0 0.0
    %1122 = vmatprep.mubr.f32.mxu0 0.0
    %1123 = vmatmul.mubr.f32.gmra.mxu0 %v1053
    %v1124 = vpop.f32.mrf.mxu0
    %v1125 = vadd.f32 0.0, %v1124
    %v1126 = vpop.f32.mrf.mxu0
    %1127 = vmatprep.mubr.f32.mxu0 0.0
    %1128 = vmatmul.mubr.f32.gmra.mxu0 %v1056
    %v1129 = vpop.f32.mrf.mxu0
    %v1130 = vadd.f32 0.0, %v1129
    %v1131 = vpop.f32.mrf.mxu0
    %1132 = vdwg.mxu0
    %1135 = vrot.lane.b32.xlu0 %v1125, 32
    %v1136 = vpop.permute.xlu0 %1135
    %1137 = vrot.lane.b32.xlu0 %v1130, 32
    %v1138 = vpop.permute.xlu0 %1137
    %v1141 = vadd.f32 %v178, %v1136
    %v1142 = vadd.f32 %v183, %v1138
    %v1143 = vxor.u32 %v1141, 2147483648
    %v1144 = vxor.u32 %v1142, 2147483648
    %v1145 = vmul.f32 %v1143, 1.442695
    %v1146 = vpow.pop %v1145
    %v1147 = vmul.f32 %v1144, 1.442695
    %v1148 = vpow.pop %v1147
    %v1149 = vadd.f32 %v1146, 1.0
    %v1150 = vadd.f32 %v1148, 1.0
    %v1151 = vrcp.pop %v1149
    %v1152 = vmul.f32 1.0, %v1151
    %v1153 = vrcp.pop %v1150
    %v1154 = vmul.f32 1.0, %v1153
    %v1156 = vsel %vm104, %v1050, 0
    %v1159 = vsel %vm104, %v1051, 0
    %1161 = vmatprep.subr.mxu0 0.0
    %1162 = vmatpush1.msra.mxu0 0.0
    %1163 = vmatprep.subr.mxu0 0.0
    %1164 = vmatpush1.msra.mxu0 0.0
    %1165 = vmatprep.subr.mxu0 0.0
    %1166 = vmatpush1.msra.mxu0 0.0
    %1167 = vmatprep.subr.mxu0 0.0
    %1168 = vmatpush1.msra.mxu0 0.0
    %1169 = vmatprep.subr.mxu0 0.0
    %1170 = vmatpush1.msra.mxu0 0.0
    %1171 = vmatprep.subr.mxu0 0.0
    %1172 = vmatpush1.msra.mxu0 0.0
    %1173 = vmatprep.subr.mxu0 0.0
    %1174 = vmatpush1.msra.mxu0 0.0
    %1175 = vmatprep.subr.mxu0 0.0
    %1176 = vmatpush1.msra.mxu0 0.0
    %1177 = vmatprep.subr.mxu0 0.0
    %1178 = vmatpush1.msra.mxu0 0.0
    %1179 = vmatprep.subr.mxu0 0.0
    %1180 = vmatpush1.msra.mxu0 0.0
    %1181 = vmatprep.subr.mxu0 0.0
    %1182 = vmatpush1.msra.mxu0 0.0
    %1183 = vmatprep.subr.mxu0 0.0
    %1184 = vmatpush1.msra.mxu0 0.0
    %1185 = vmatprep.subr.mxu0 0.0
    %1186 = vmatpush1.msra.mxu0 %v90
    %1187 = vmatprep.subr.mxu0 0.0
    %1188 = vmatpush1.msra.mxu0 %v89
    %1189 = vmatprep.subr.mxu0 0.0
    %1190 = vmatpush1.msra.mxu0 %v88
    %1191 = vmatprep.subr.mxu0 0.0
    %1192 = vmatpush1.msra.mxu0 %v87
    %1193 = vmatprep.subr.mxu0 0.0
    %1194 = vmatpush2.msra.mxu0 0.0
    %1195 = vmatprep.subr.mxu0 0.0
    %1196 = vmatpush2.msra.mxu0 0.0
    %1197 = vmatprep.subr.mxu0 0.0
    %1198 = vmatpush2.msra.mxu0 0.0
    %1199 = vmatprep.subr.mxu0 0.0
    %1200 = vmatpush2.msra.mxu0 0.0
    %1201 = vmatprep.subr.mxu0 0.0
    %1202 = vmatpush2.msra.mxu0 0.0
    %1203 = vmatprep.subr.mxu0 0.0
    %1204 = vmatpush2.msra.mxu0 0.0
    %1205 = vmatprep.subr.mxu0 0.0
    %1206 = vmatpush2.msra.mxu0 0.0
    %1207 = vmatprep.subr.mxu0 0.0
    %1208 = vmatpush2.msra.mxu0 0.0
    %1209 = vmatprep.subr.mxu0 0.0
    %1210 = vmatpush2.msra.mxu0 0.0
    %1211 = vmatprep.subr.mxu0 0.0
    %1212 = vmatpush2.msra.mxu0 0.0
    %1213 = vmatprep.subr.mxu0 0.0
    %1214 = vmatpush2.msra.mxu0 0.0
    %1215 = vmatprep.subr.mxu0 0.0
    %1216 = vmatpush2.msra.mxu0 0.0
    %1217 = vmatprep.subr.mxu0 0.0
    %1218 = vmatpush2.msra.mxu0 0.0
    %1219 = vmatprep.subr.mxu0 0.0
    %1220 = vmatpush2.msra.mxu0 0.0
    %1221 = vmatprep.subr.mxu0 0.0
    %1222 = vmatpush2.msra.mxu0 0.0
    %1223 = vmatprep.subr.mxu0 0.0
    %1224 = vmatpush2.msra.mxu0 0.0
    %1225 = vmatprep.mubr.f32.mxu0 0.0
    %1226 = vmatmul.mubr.f32.gmra.mxu0 %v1156
    %v1227 = vpop.f32.mrf.mxu0
    %v1228 = vadd.f32 0.0, %v1227
    %v1229 = vpop.f32.mrf.mxu0
    %1230 = vmatprep.mubr.f32.mxu0 0.0
    %1231 = vmatmul.mubr.f32.gmra.mxu0 %v1159
    %v1232 = vpop.f32.mrf.mxu0
    %v1233 = vadd.f32 0.0, %v1232
    %v1234 = vpop.f32.mrf.mxu0
    %1235 = vdwg.mxu0
    %1238 = vrot.lane.b32.xlu0 %v1228, 64
    %v1239 = vpop.permute.xlu0 %1238
    %1240 = vrot.lane.b32.xlu0 %v1233, 64
    %v1241 = vpop.permute.xlu0 %1240
    %v1244 = vadd.f32 %v178, %v1239
    %v1245 = vadd.f32 %v183, %v1241
    %v1246 = vtanh.pop %v1244
    %v1247 = vtanh.pop %v1245
    %v1248 = vsub.f32 1.0, %v1152
    %v1249 = vsub.f32 1.0, %v1154
    %1250 = vrot.lane.b32.xlu0 %v1046, 32
    %v1251 = vpop.permute.xlu0 %1250
    %1252 = vrot.lane.b32.xlu0 %v1047, 32
    %v1253 = vpop.permute.xlu0 %1252
    %v1256 = vmul.f32 %v1248, %v1251
    %v1257 = vmul.f32 %v1249, %v1253
    %1260 = vrot.lane.b32.xlu0 %v1246, 96
    %v1261 = vpop.permute.xlu0 %1260
    %1262 = vrot.lane.b32.xlu0 %v1247, 96
    %v1263 = vpop.permute.xlu0 %1262
    %v1266 = vmul.f32 %v1152, %v1261
    %v1267 = vmul.f32 %v1154, %v1263
    %v1268 = vadd.f32 %v1256, %v1266
    %v1269 = vadd.f32 %v1257, %v1267
    %v1270 = vmul.f32 %v1268, %v733
    %v1271 = vmul.f32 %v1269, %v738
    %1274 = vrot.lane.b32.xlu0 %v1270, 96
    %v1275 = vpop.permute.xlu0 %1274
    %1276 = vrot.lane.b32.xlu0 %v1271, 96
    %v1277 = vpop.permute.xlu0 %1276
    %v1278 = vsel %vm104, %v1275, 0
    %v1280 = vsel %vm104, %v1277, 0
    %1282 = vmatprep.subr.mxu0 0.0
    %1283 = vmatpush1.msra.mxu0 0.0
    %1284 = vmatprep.subr.mxu0 0.0
    %1285 = vmatpush1.msra.mxu0 0.0
    %1286 = vmatprep.subr.mxu0 0.0
    %1287 = vmatpush1.msra.mxu0 0.0
    %1288 = vmatprep.subr.mxu0 0.0
    %1289 = vmatpush1.msra.mxu0 0.0
    %1290 = vmatprep.subr.mxu0 0.0
    %1291 = vmatpush1.msra.mxu0 0.0
    %1292 = vmatprep.subr.mxu0 0.0
    %1293 = vmatpush1.msra.mxu0 0.0
    %1294 = vmatprep.subr.mxu0 0.0
    %1295 = vmatpush1.msra.mxu0 0.0
    %1296 = vmatprep.subr.mxu0 0.0
    %1297 = vmatpush1.msra.mxu0 0.0
    %1298 = vmatprep.subr.mxu0 0.0
    %1299 = vmatpush1.msra.mxu0 0.0
    %1300 = vmatprep.subr.mxu0 0.0
    %1301 = vmatpush1.msra.mxu0 0.0
    %1302 = vmatprep.subr.mxu0 0.0
    %1303 = vmatpush1.msra.mxu0 0.0
    %1304 = vmatprep.subr.mxu0 0.0
    %1305 = vmatpush1.msra.mxu0 0.0
    %1306 = vmatprep.subr.mxu0 0.0
    %1307 = vmatpush1.msra.mxu0 %v82
    %1308 = vmatprep.subr.mxu0 0.0
    %1309 = vmatpush1.msra.mxu0 %v81
    %1310 = vmatprep.subr.mxu0 0.0
    %1311 = vmatpush1.msra.mxu0 %v80
    %1312 = vmatprep.subr.mxu0 0.0
    %1313 = vmatpush1.msra.mxu0 %v79
    %1314 = vmatprep.subr.mxu0 0.0
    %1315 = vmatpush2.msra.mxu0 0.0
    %1316 = vmatprep.subr.mxu0 0.0
    %1317 = vmatpush2.msra.mxu0 0.0
    %1318 = vmatprep.subr.mxu0 0.0
    %1319 = vmatpush2.msra.mxu0 0.0
    %1320 = vmatprep.subr.mxu0 0.0
    %1321 = vmatpush2.msra.mxu0 0.0
    %1322 = vmatprep.subr.mxu0 0.0
    %1323 = vmatpush2.msra.mxu0 0.0
    %1324 = vmatprep.subr.mxu0 0.0
    %1325 = vmatpush2.msra.mxu0 0.0
    %1326 = vmatprep.subr.mxu0 0.0
    %1327 = vmatpush2.msra.mxu0 0.0
    %1328 = vmatprep.subr.mxu0 0.0
    %1329 = vmatpush2.msra.mxu0 0.0
    %1330 = vmatprep.subr.mxu0 0.0
    %1331 = vmatpush2.msra.mxu0 0.0
    %1332 = vmatprep.subr.mxu0 0.0
    %1333 = vmatpush2.msra.mxu0 0.0
    %1334 = vmatprep.subr.mxu0 0.0
    %1335 = vmatpush2.msra.mxu0 0.0
    %1336 = vmatprep.subr.mxu0 0.0
    %1337 = vmatpush2.msra.mxu0 0.0
    %1338 = vmatprep.subr.mxu0 0.0
    %1339 = vmatpush2.msra.mxu0 0.0
    %1340 = vmatprep.subr.mxu0 0.0
    %1341 = vmatpush2.msra.mxu0 0.0
    %1342 = vmatprep.subr.mxu0 0.0
    %1343 = vmatpush2.msra.mxu0 0.0
    %1344 = vmatprep.subr.mxu0 0.0
    %1345 = vmatpush2.msra.mxu0 0.0
    %1346 = vmatprep.mubr.f32.mxu0 0.0
    %1347 = vmatmul.mubr.f32.gmra.mxu0 %v1278
    %v1348 = vpop.f32.mrf.mxu0
    %v1349 = vadd.f32 0.0, %v1348
    %v1350 = vpop.f32.mrf.mxu0
    %1351 = vmatprep.mubr.f32.mxu0 0.0
    %1352 = vmatmul.mubr.f32.gmra.mxu0 %v1280
    %v1353 = vpop.f32.mrf.mxu0
    %v1354 = vadd.f32 0.0, %v1353
    %v1355 = vpop.f32.mrf.mxu0
    %1356 = vdwg.mxu0
    %1361 = vrot.lane.b32.xlu0 %v1349, 32
    %v1362 = vpop.permute.xlu0 %1361
    %1363 = vrot.lane.b32.xlu0 %v1354, 32
    %v1364 = vpop.permute.xlu0 %1363
    %v1367 = vsel %vm104, %v1275, %v1362
    %v1368 = vsel %vm104, %v1277, %v1364
    %1369 = vmatprep.subr.mxu0 0.0
    %1370 = vmatpush1.msra.mxu0 0.0
    %1371 = vmatprep.subr.mxu0 0.0
    %1372 = vmatpush1.msra.mxu0 0.0
    %1373 = vmatprep.subr.mxu0 0.0
    %1374 = vmatpush1.msra.mxu0 0.0
    %1375 = vmatprep.subr.mxu0 0.0
    %1376 = vmatpush1.msra.mxu0 0.0
    %1377 = vmatprep.subr.mxu0 0.0
    %1378 = vmatpush1.msra.mxu0 0.0
    %1379 = vmatprep.subr.mxu0 0.0
    %1380 = vmatpush1.msra.mxu0 0.0
    %1381 = vmatprep.subr.mxu0 0.0
    %1382 = vmatpush1.msra.mxu0 0.0
    %1383 = vmatprep.subr.mxu0 0.0
    %1384 = vmatpush1.msra.mxu0 0.0
    %1385 = vmatprep.subr.mxu0 0.0
    %1386 = vmatpush1.msra.mxu0 0.0
    %1387 = vmatprep.subr.mxu0 0.0
    %1388 = vmatpush1.msra.mxu0 0.0
    %1389 = vmatprep.subr.mxu0 0.0
    %1390 = vmatpush1.msra.mxu0 0.0
    %1391 = vmatprep.subr.mxu0 0.0
    %1392 = vmatpush1.msra.mxu0 0.0
    %1393 = vmatprep.subr.mxu0 0.0
    %1394 = vmatpush1.msra.mxu0 0.0
    %1395 = vmatprep.subr.mxu0 0.0
    %1396 = vmatpush1.msra.mxu0 0.0
    %1397 = vmatprep.subr.mxu0 0.0
    %1398 = vmatpush1.msra.mxu0 %v1368
    %1399 = vmatprep.subr.mxu0 0.0
    %1400 = vmatpush1.msra.mxu0 %v1367
    %1401 = vmatprep.subr.mxu0 0.0
    %1402 = vmatpush2.msra.mxu0 0.0
    %1403 = vmatprep.subr.mxu0 0.0
    %1404 = vmatpush2.msra.mxu0 0.0
    %1405 = vmatprep.subr.mxu0 0.0
    %1406 = vmatpush2.msra.mxu0 0.0
    %1407 = vmatprep.subr.mxu0 0.0
    %1408 = vmatpush2.msra.mxu0 0.0
    %1409 = vmatprep.subr.mxu0 0.0
    %1410 = vmatpush2.msra.mxu0 0.0
    %1411 = vmatprep.subr.mxu0 0.0
    %1412 = vmatpush2.msra.mxu0 0.0
    %1413 = vmatprep.subr.mxu0 0.0
    %1414 = vmatpush2.msra.mxu0 0.0
    %1415 = vmatprep.subr.mxu0 0.0
    %1416 = vmatpush2.msra.mxu0 0.0
    %1417 = vmatprep.subr.mxu0 0.0
    %1418 = vmatpush2.msra.mxu0 0.0
    %1419 = vmatprep.subr.mxu0 0.0
    %1420 = vmatpush2.msra.mxu0 0.0
    %1421 = vmatprep.subr.mxu0 0.0
    %1422 = vmatpush2.msra.mxu0 0.0
    %1423 = vmatprep.subr.mxu0 0.0
    %1424 = vmatpush2.msra.mxu0 0.0
    %1425 = vmatprep.subr.mxu0 0.0
    %1426 = vmatpush2.msra.mxu0 0.0
    %1427 = vmatprep.subr.mxu0 0.0
    %1428 = vmatpush2.msra.mxu0 0.0
    %1429 = vmatprep.subr.mxu0 0.0
    %1430 = vmatpush2.msra.mxu0 0.0
    %1431 = vmatprep.subr.mxu0 0.0
    %1432 = vmatpush2.msra.mxu0 0.0
    %1433 = vmatprep.mubr.f32.mxu0 0.0
    %1434 = vmatmul.mubr.f32.gmra.mxu0 %v276
    %v1435 = vpop.f32.mrf.mxu0
    %v1436 = vadd.f32 0.0, %v1435
    %v1437 = vpop.f32.mrf.mxu0
    %1438 = vmatprep.mubr.f32.mxu0 0.0
    %1439 = vmatmul.mubr.f32.gmra.mxu0 %v279
    %v1440 = vpop.f32.mrf.mxu0
    %v1441 = vadd.f32 0.0, %v1440
    %v1442 = vpop.f32.mrf.mxu0
    %1443 = vmatprep.mubr.f32.mxu0 0.0
    %1444 = vmatmul.mubr.f32.gmra.mxu0 %v282
    %v1445 = vpop.f32.mrf.mxu0
    %v1446 = vadd.f32 0.0, %v1445
    %v1447 = vpop.f32.mrf.mxu0
    %1448 = vmatprep.mubr.f32.mxu0 0.0
    %1449 = vmatmul.mubr.f32.gmra.mxu0 %v285
    %v1450 = vpop.f32.mrf.mxu0
    %v1451 = vadd.f32 0.0, %v1450
    %v1452 = vpop.f32.mrf.mxu0
    %1453 = vmatprep.mubr.f32.mxu0 0.0
    %1454 = vmatmul.mubr.f32.gmra.mxu0 %v288
    %v1455 = vpop.f32.mrf.mxu0
    %v1456 = vadd.f32 0.0, %v1455
    %v1457 = vpop.f32.mrf.mxu0
    %1458 = vmatprep.mubr.f32.mxu0 0.0
    %1459 = vmatmul.mubr.f32.gmra.mxu0 %v291
    %v1460 = vpop.f32.mrf.mxu0
    %v1461 = vadd.f32 0.0, %v1460
    %v1462 = vpop.f32.mrf.mxu0
    %1463 = vmatprep.mubr.f32.mxu0 0.0
    %1464 = vmatmul.mubr.f32.gmra.mxu0 %v294
    %v1465 = vpop.f32.mrf.mxu0
    %v1466 = vadd.f32 0.0, %v1465
    %v1467 = vpop.f32.mrf.mxu0
    %1468 = vmatprep.mubr.f32.mxu0 0.0
    %1469 = vmatmul.mubr.f32.gmra.mxu0 %v297
    %v1470 = vpop.f32.mrf.mxu0
    %v1471 = vadd.f32 0.0, %v1470
    %v1472 = vpop.f32.mrf.mxu0
    %1473 = vdwg.mxu0
    %1476 = vrot.lane.b32.xlu0 %v1436, 96
    %v1477 = vpop.permute.xlu0 %1476
    %1478 = vrot.lane.b32.xlu0 %v1441, 96
    %v1479 = vpop.permute.xlu0 %1478
    %v1482 = vadd.f32 %v178, %v1477
    %v1483 = vadd.f32 %v183, %v1479
    %v1484 = vxor.u32 %v1482, 2147483648
    %v1485 = vxor.u32 %v1483, 2147483648
    %v1486 = vmul.f32 %v1484, 1.442695
    %v1487 = vpow.pop %v1486
    %v1488 = vmul.f32 %v1485, 1.442695
    %v1489 = vpow.pop %v1488
    %v1490 = vadd.f32 %v1487, 1.0
    %v1491 = vadd.f32 %v1489, 1.0
    %v1492 = vrcp.pop %v1490
    %v1493 = vmul.f32 1.0, %v1492
    %v1494 = vrcp.pop %v1491
    %v1495 = vmul.f32 1.0, %v1494
    %v1496 = vmul.f32 %v1493, %v1436
    %v1497 = vmul.f32 %v1495, %v1441
    %1500 = vrot.lane.b32.xlu0 %v1446, 96
    %v1501 = vpop.permute.xlu0 %1500
    %1502 = vrot.lane.b32.xlu0 %v1451, 96
    %v1503 = vpop.permute.xlu0 %1502
    %v1506 = vadd.f32 %v178, %v1501
    %v1507 = vadd.f32 %v183, %v1503
    %v1508 = vxor.u32 %v1506, 2147483648
    %v1509 = vxor.u32 %v1507, 2147483648
    %v1510 = vmul.f32 %v1508, 1.442695
    %v1511 = vpow.pop %v1510
    %v1512 = vmul.f32 %v1509, 1.442695
    %v1513 = vpow.pop %v1512
    %v1514 = vadd.f32 %v1511, 1.0
    %v1515 = vadd.f32 %v1513, 1.0
    %v1516 = vrcp.pop %v1514
    %v1517 = vmul.f32 1.0, %v1516
    %v1518 = vrcp.pop %v1515
    %v1519 = vmul.f32 1.0, %v1518
    %v1520 = vadd.f32 %v1436, %v1446
    %v1521 = vadd.f32 %v1441, %v1451
    %v1522 = vmul.f32 %v1517, %v1446
    %v1523 = vmul.f32 %v1519, %v1451
    %v1524 = vadd.f32 %v1496, %v1522
    %v1525 = vadd.f32 %v1497, %v1523
    %1528 = vrot.lane.b32.xlu0 %v1456, 96
    %v1529 = vpop.permute.xlu0 %1528
    %1530 = vrot.lane.b32.xlu0 %v1461, 96
    %v1531 = vpop.permute.xlu0 %1530
    %v1534 = vadd.f32 %v178, %v1529
    %v1535 = vadd.f32 %v183, %v1531
    %v1536 = vxor.u32 %v1534, 2147483648
    %v1537 = vxor.u32 %v1535, 2147483648
    %v1538 = vmul.f32 %v1536, 1.442695
    %v1539 = vpow.pop %v1538
    %v1540 = vmul.f32 %v1537, 1.442695
    %v1541 = vpow.pop %v1540
    %v1542 = vadd.f32 %v1539, 1.0
    %v1543 = vadd.f32 %v1541, 1.0
    %v1544 = vrcp.pop %v1542
    %v1545 = vmul.f32 1.0, %v1544
    %v1546 = vrcp.pop %v1543
    %v1547 = vmul.f32 1.0, %v1546
    %v1548 = vadd.f32 %v1520, %v1456
    %v1549 = vadd.f32 %v1521, %v1461
    %v1550 = vmul.f32 %v1545, %v1456
    %v1551 = vmul.f32 %v1547, %v1461
    %v1552 = vadd.f32 %v1524, %v1550
    %v1553 = vadd.f32 %v1525, %v1551
    %1556 = vrot.lane.b32.xlu0 %v1466, 96
    %v1557 = vpop.permute.xlu0 %1556
    %1558 = vrot.lane.b32.xlu0 %v1471, 96
    %v1559 = vpop.permute.xlu0 %1558
    %v1562 = vadd.f32 %v178, %v1557
    %v1563 = vadd.f32 %v183, %v1559
    %v1564 = vxor.u32 %v1562, 2147483648
    %v1565 = vxor.u32 %v1563, 2147483648
    %v1566 = vmul.f32 %v1564, 1.442695
    %v1567 = vpow.pop %v1566
    %v1568 = vmul.f32 %v1565, 1.442695
    %v1569 = vpow.pop %v1568
    %v1570 = vadd.f32 %v1567, 1.0
    %v1571 = vadd.f32 %v1569, 1.0
    %v1572 = vrcp.pop %v1570
    %v1573 = vmul.f32 1.0, %v1572
    %v1574 = vrcp.pop %v1571
    %v1575 = vmul.f32 1.0, %v1574
    %v1576 = vadd.f32 %v1548, %v1466
    %v1577 = vadd.f32 %v1549, %v1471
    %v1578 = vmul.f32 %v1573, %v1466
    %v1579 = vmul.f32 %v1575, %v1471
    %v1580 = vadd.f32 %v1552, %v1578
    %v1581 = vadd.f32 %v1553, %v1579
    %v1583 = vsel %vm104, %v1576, 0
    %v1586 = vsel %vm104, %v1577, 0
    %1588 = vmatprep.subr.mxu0 0.0
    %1589 = vmatpush1.msra.mxu0 0.0
    %1590 = vmatprep.subr.mxu0 0.0
    %1591 = vmatpush1.msra.mxu0 0.0
    %1592 = vmatprep.subr.mxu0 0.0
    %1593 = vmatpush1.msra.mxu0 0.0
    %1594 = vmatprep.subr.mxu0 0.0
    %1595 = vmatpush1.msra.mxu0 0.0
    %1596 = vmatprep.subr.mxu0 0.0
    %1597 = vmatpush1.msra.mxu0 0.0
    %1598 = vmatprep.subr.mxu0 0.0
    %1599 = vmatpush1.msra.mxu0 0.0
    %1600 = vmatprep.subr.mxu0 0.0
    %1601 = vmatpush1.msra.mxu0 0.0
    %1602 = vmatprep.subr.mxu0 0.0
    %1603 = vmatpush1.msra.mxu0 0.0
    %1604 = vmatprep.subr.mxu0 0.0
    %1605 = vmatpush1.msra.mxu0 0.0
    %1606 = vmatprep.subr.mxu0 0.0
    %1607 = vmatpush1.msra.mxu0 0.0
    %1608 = vmatprep.subr.mxu0 0.0
    %1609 = vmatpush1.msra.mxu0 0.0
    %1610 = vmatprep.subr.mxu0 0.0
    %1611 = vmatpush1.msra.mxu0 0.0
    %1612 = vmatprep.subr.mxu0 0.0
    %1613 = vmatpush1.msra.mxu0 %v86
    %1614 = vmatprep.subr.mxu0 0.0
    %1615 = vmatpush1.msra.mxu0 %v85
    %1616 = vmatprep.subr.mxu0 0.0
    %1617 = vmatpush1.msra.mxu0 %v84
    %1618 = vmatprep.subr.mxu0 0.0
    %1619 = vmatpush1.msra.mxu0 %v83
    %1620 = vmatprep.subr.mxu0 0.0
    %1621 = vmatpush2.msra.mxu0 0.0
    %1622 = vmatprep.subr.mxu0 0.0
    %1623 = vmatpush2.msra.mxu0 0.0
    %1624 = vmatprep.subr.mxu0 0.0
    %1625 = vmatpush2.msra.mxu0 0.0
    %1626 = vmatprep.subr.mxu0 0.0
    %1627 = vmatpush2.msra.mxu0 0.0
    %1628 = vmatprep.subr.mxu0 0.0
    %1629 = vmatpush2.msra.mxu0 0.0
    %1630 = vmatprep.subr.mxu0 0.0
    %1631 = vmatpush2.msra.mxu0 0.0
    %1632 = vmatprep.subr.mxu0 0.0
    %1633 = vmatpush2.msra.mxu0 0.0
    %1634 = vmatprep.subr.mxu0 0.0
    %1635 = vmatpush2.msra.mxu0 0.0
    %1636 = vmatprep.subr.mxu0 0.0
    %1637 = vmatpush2.msra.mxu0 0.0
    %1638 = vmatprep.subr.mxu0 0.0
    %1639 = vmatpush2.msra.mxu0 0.0
    %1640 = vmatprep.subr.mxu0 0.0
    %1641 = vmatpush2.msra.mxu0 0.0
    %1642 = vmatprep.subr.mxu0 0.0
    %1643 = vmatpush2.msra.mxu0 0.0
    %1644 = vmatprep.subr.mxu0 0.0
    %1645 = vmatpush2.msra.mxu0 0.0
    %1646 = vmatprep.subr.mxu0 0.0
    %1647 = vmatpush2.msra.mxu0 0.0
    %1648 = vmatprep.subr.mxu0 0.0
    %1649 = vmatpush2.msra.mxu0 0.0
    %1650 = vmatprep.subr.mxu0 0.0
    %1651 = vmatpush2.msra.mxu0 0.0
    %1652 = vmatprep.mubr.f32.mxu0 0.0
    %1653 = vmatmul.mubr.f32.gmra.mxu0 %v1583
    %v1654 = vpop.f32.mrf.mxu0
    %v1655 = vadd.f32 0.0, %v1654
    %v1656 = vpop.f32.mrf.mxu0
    %1657 = vmatprep.mubr.f32.mxu0 0.0
    %1658 = vmatmul.mubr.f32.gmra.mxu0 %v1586
    %v1659 = vpop.f32.mrf.mxu0
    %v1660 = vadd.f32 0.0, %v1659
    %v1661 = vpop.f32.mrf.mxu0
    %1662 = vdwg.mxu0
    %1665 = vrot.lane.b32.xlu0 %v1655, 32
    %v1666 = vpop.permute.xlu0 %1665
    %1667 = vrot.lane.b32.xlu0 %v1660, 32
    %v1668 = vpop.permute.xlu0 %1667
    %v1671 = vadd.f32 %v178, %v1666
    %v1672 = vadd.f32 %v183, %v1668
    %v1673 = vxor.u32 %v1671, 2147483648
    %v1674 = vxor.u32 %v1672, 2147483648
    %v1675 = vmul.f32 %v1673, 1.442695
    %v1676 = vpow.pop %v1675
    %v1677 = vmul.f32 %v1674, 1.442695
    %v1678 = vpow.pop %v1677
    %v1679 = vadd.f32 %v1676, 1.0
    %v1680 = vadd.f32 %v1678, 1.0
    %v1681 = vrcp.pop %v1679
    %v1682 = vmul.f32 1.0, %v1681
    %v1683 = vrcp.pop %v1680
    %v1684 = vmul.f32 1.0, %v1683
    %v1686 = vsel %vm104, %v1580, 0
    %v1689 = vsel %vm104, %v1581, 0
    %1691 = vmatprep.subr.mxu0 0.0
    %1692 = vmatpush1.msra.mxu0 0.0
    %1693 = vmatprep.subr.mxu0 0.0
    %1694 = vmatpush1.msra.mxu0 0.0
    %1695 = vmatprep.subr.mxu0 0.0
    %1696 = vmatpush1.msra.mxu0 0.0
    %1697 = vmatprep.subr.mxu0 0.0
    %1698 = vmatpush1.msra.mxu0 0.0
    %1699 = vmatprep.subr.mxu0 0.0
    %1700 = vmatpush1.msra.mxu0 0.0
    %1701 = vmatprep.subr.mxu0 0.0
    %1702 = vmatpush1.msra.mxu0 0.0
    %1703 = vmatprep.subr.mxu0 0.0
    %1704 = vmatpush1.msra.mxu0 0.0
    %1705 = vmatprep.subr.mxu0 0.0
    %1706 = vmatpush1.msra.mxu0 0.0
    %1707 = vmatprep.subr.mxu0 0.0
    %1708 = vmatpush1.msra.mxu0 0.0
    %1709 = vmatprep.subr.mxu0 0.0
    %1710 = vmatpush1.msra.mxu0 0.0
    %1711 = vmatprep.subr.mxu0 0.0
    %1712 = vmatpush1.msra.mxu0 0.0
    %1713 = vmatprep.subr.mxu0 0.0
    %1714 = vmatpush1.msra.mxu0 0.0
    %1715 = vmatprep.subr.mxu0 0.0
    %1716 = vmatpush1.msra.mxu0 %v90
    %1717 = vmatprep.subr.mxu0 0.0
    %1718 = vmatpush1.msra.mxu0 %v89
    %1719 = vmatprep.subr.mxu0 0.0
    %1720 = vmatpush1.msra.mxu0 %v88
    %1721 = vmatprep.subr.mxu0 0.0
    %1722 = vmatpush1.msra.mxu0 %v87
    %1723 = vmatprep.subr.mxu0 0.0
    %1724 = vmatpush2.msra.mxu0 0.0
    %1725 = vmatprep.subr.mxu0 0.0
    %1726 = vmatpush2.msra.mxu0 0.0
    %1727 = vmatprep.subr.mxu0 0.0
    %1728 = vmatpush2.msra.mxu0 0.0
    %1729 = vmatprep.subr.mxu0 0.0
    %1730 = vmatpush2.msra.mxu0 0.0
    %1731 = vmatprep.subr.mxu0 0.0
    %1732 = vmatpush2.msra.mxu0 0.0
    %1733 = vmatprep.subr.mxu0 0.0
    %1734 = vmatpush2.msra.mxu0 0.0
    %1735 = vmatprep.subr.mxu0 0.0
    %1736 = vmatpush2.msra.mxu0 0.0
    %1737 = vmatprep.subr.mxu0 0.0
    %1738 = vmatpush2.msra.mxu0 0.0
    %1739 = vmatprep.subr.mxu0 0.0
    %1740 = vmatpush2.msra.mxu0 0.0
    %1741 = vmatprep.subr.mxu0 0.0
    %1742 = vmatpush2.msra.mxu0 0.0
    %1743 = vmatprep.subr.mxu0 0.0
    %1744 = vmatpush2.msra.mxu0 0.0
    %1745 = vmatprep.subr.mxu0 0.0
    %1746 = vmatpush2.msra.mxu0 0.0
    %1747 = vmatprep.subr.mxu0 0.0
    %1748 = vmatpush2.msra.mxu0 0.0
    %1749 = vmatprep.subr.mxu0 0.0
    %1750 = vmatpush2.msra.mxu0 0.0
    %1751 = vmatprep.subr.mxu0 0.0
    %1752 = vmatpush2.msra.mxu0 0.0
    %1753 = vmatprep.subr.mxu0 0.0
    %1754 = vmatpush2.msra.mxu0 0.0
    %1755 = vmatprep.mubr.f32.mxu0 0.0
    %1756 = vmatmul.mubr.f32.gmra.mxu0 %v1686
    %v1757 = vpop.f32.mrf.mxu0
    %v1758 = vadd.f32 0.0, %v1757
    %v1759 = vpop.f32.mrf.mxu0
    %1760 = vmatprep.mubr.f32.mxu0 0.0
    %1761 = vmatmul.mubr.f32.gmra.mxu0 %v1689
    %v1762 = vpop.f32.mrf.mxu0
    %v1763 = vadd.f32 0.0, %v1762
    %v1764 = vpop.f32.mrf.mxu0
    %1765 = vdwg.mxu0
    %1768 = vrot.lane.b32.xlu0 %v1758, 64
    %v1769 = vpop.permute.xlu0 %1768
    %1770 = vrot.lane.b32.xlu0 %v1763, 64
    %v1771 = vpop.permute.xlu0 %1770
    %v1774 = vadd.f32 %v178, %v1769
    %v1775 = vadd.f32 %v183, %v1771
    %v1776 = vtanh.pop %v1774
    %v1777 = vtanh.pop %v1775
    %v1778 = vsub.f32 1.0, %v1682
    %v1779 = vsub.f32 1.0, %v1684
    %1780 = vrot.lane.b32.xlu0 %v1576, 32
    %v1781 = vpop.permute.xlu0 %1780
    %1782 = vrot.lane.b32.xlu0 %v1577, 32
    %v1783 = vpop.permute.xlu0 %1782
    %v1786 = vmul.f32 %v1778, %v1781
    %v1787 = vmul.f32 %v1779, %v1783
    %1790 = vrot.lane.b32.xlu0 %v1776, 96
    %v1791 = vpop.permute.xlu0 %1790
    %1792 = vrot.lane.b32.xlu0 %v1777, 96
    %v1793 = vpop.permute.xlu0 %1792
    %v1796 = vmul.f32 %v1682, %v1791
    %v1797 = vmul.f32 %v1684, %v1793
    %v1798 = vadd.f32 %v1786, %v1796
    %v1799 = vadd.f32 %v1787, %v1797
    %v1800 = vmul.f32 %v1798, %v733
    %v1801 = vmul.f32 %v1799, %v738
    %1804 = vrot.lane.b32.xlu0 %v1800, 96
    %v1805 = vpop.permute.xlu0 %1804
    %1806 = vrot.lane.b32.xlu0 %v1801, 96
    %v1807 = vpop.permute.xlu0 %1806
    %1810 = vst.msk [vmem:[#allocation8] sm:$0xff] %vm104, %v1805
    %1811 = vst.msk [vmem:[#allocation8 + $0x8] sm:$0xff] %vm104, %v1807
    %v1812 = vld [vmem:[#allocation5] sm:$0xff]
    %v1814 = vsel %vm274, %v1812, 0
    %1816 = vmatprep.subr.mxu0 0.0
    %1817 = vmatpush1.msra.mxu0 0.0
    %1818 = vmatprep.subr.mxu0 0.0
    %1819 = vmatpush1.msra.mxu0 0.0
    %1820 = vmatprep.subr.mxu0 0.0
    %1821 = vmatpush1.msra.mxu0 0.0
    %1822 = vmatprep.subr.mxu0 0.0
    %1823 = vmatpush1.msra.mxu0 0.0
    %1824 = vmatprep.subr.mxu0 0.0
    %1825 = vmatpush1.msra.mxu0 0.0
    %1826 = vmatprep.subr.mxu0 0.0
    %1827 = vmatpush1.msra.mxu0 0.0
    %1828 = vmatprep.subr.mxu0 0.0
    %1829 = vmatpush1.msra.mxu0 0.0
    %1830 = vmatprep.subr.mxu0 0.0
    %1831 = vmatpush1.msra.mxu0 0.0
    %1832 = vmatprep.subr.mxu0 0.0
    %1833 = vmatpush1.msra.mxu0 0.0
    %1834 = vmatprep.subr.mxu0 0.0
    %1835 = vmatpush1.msra.mxu0 0.0
    %1836 = vmatprep.subr.mxu0 0.0
    %1837 = vmatpush1.msra.mxu0 0.0
    %1838 = vmatprep.subr.mxu0 0.0
    %1839 = vmatpush1.msra.mxu0 0.0
    %1840 = vmatprep.subr.mxu0 0.0
    %1841 = vmatpush1.msra.mxu0 0.0
    %1842 = vmatprep.subr.mxu0 0.0
    %1843 = vmatpush1.msra.mxu0 0.0
    %1844 = vmatprep.subr.mxu0 0.0
    %1845 = vmatpush1.msra.mxu0 %v1807
    %1846 = vmatprep.subr.mxu0 0.0
    %1847 = vmatpush1.msra.mxu0 %v1805
    %1848 = vmatprep.subr.mxu0 0.0
    %1849 = vmatpush2.msra.mxu0 0.0
    %1850 = vmatprep.subr.mxu0 0.0
    %1851 = vmatpush2.msra.mxu0 0.0
    %1852 = vmatprep.subr.mxu0 0.0
    %1853 = vmatpush2.msra.mxu0 0.0
    %1854 = vmatprep.subr.mxu0 0.0
    %1855 = vmatpush2.msra.mxu0 0.0
    %1856 = vmatprep.subr.mxu0 0.0
    %1857 = vmatpush2.msra.mxu0 0.0
    %1858 = vmatprep.subr.mxu0 0.0
    %1859 = vmatpush2.msra.mxu0 0.0
    %1860 = vmatprep.subr.mxu0 0.0
    %1861 = vmatpush2.msra.mxu0 0.0
    %1862 = vmatprep.subr.mxu0 0.0
    %1863 = vmatpush2.msra.mxu0 0.0
    %1864 = vmatprep.subr.mxu0 0.0
    %1865 = vmatpush2.msra.mxu0 0.0
    %1866 = vmatprep.subr.mxu0 0.0
    %1867 = vmatpush2.msra.mxu0 0.0
    %1868 = vmatprep.subr.mxu0 0.0
    %1869 = vmatpush2.msra.mxu0 0.0
    %1870 = vmatprep.subr.mxu0 0.0
    %1871 = vmatpush2.msra.mxu0 0.0
    %1872 = vmatprep.subr.mxu0 0.0
    %1873 = vmatpush2.msra.mxu0 0.0
    %1874 = vmatprep.subr.mxu0 0.0
    %1875 = vmatpush2.msra.mxu0 0.0
    %1876 = vmatprep.subr.mxu0 0.0
    %1877 = vmatpush2.msra.mxu0 0.0
    %1878 = vmatprep.subr.mxu0 0.0
    %1879 = vmatpush2.msra.mxu0 0.0
    %1880 = vmatprep.mubr.f32.mxu0 0.0
    %1881 = vmatmul.mubr.f32.gmra.mxu0 %v1814
    %v1882 = vpop.f32.mrf.mxu0
    %v1883 = vadd.f32 0.0, %v1882
    %v1884 = vpop.f32.mrf.mxu0
    %1885 = vdwg.mxu0
    %v1886 = vld [vmem:[#allocation2] sm:$0xff]
    %1888 = vrot.lane.b32.xlu0 %v1883, 32
    %v1889 = vpop.permute.xlu0 %1888
    %v1891 = vsel %vm104, %v1886, %v1889
    %v1892 = vld [vmem:[%s10] sm:$0xff]
    %v1893 = vld [vmem:[%s10 + $0x8] sm:$0xff]
    %v1894 = vld [vmem:[%s10 + $0x10] sm:$0xff]
    %v1895 = vld [vmem:[%s10 + $0x18] sm:$0xff]
    %v1896 = vld [vmem:[%s10 + $0x20] sm:$0xff]
    %v1897 = vld [vmem:[%s10 + $0x28] sm:$0xff]
    %v1898 = vld [vmem:[%s10 + $0x30] sm:$0xff]
    %v1899 = vld [vmem:[%s10 + $0x38] sm:$0xff]
    %v1900 = vld [vmem:[%s11] sm:$0x1]
    %v1902 = vlaneseq
    %v1903 = vshrl.u32 %v1902, 7
    %v1904 = vsub.s32 0, %v1903
    %v1905 = vrot.slane %v1900, %v1904
    %vm1907 = vcmask 523264
    %v1909 = vsel %vm1907, %v1891, 0
    %1911 = vmatprep.subr.mxu0 0.0
    %1912 = vmatpush1.msra.mxu0 0.0
    %1913 = vmatprep.subr.mxu0 0.0
    %1914 = vmatpush1.msra.mxu0 0.0
    %1915 = vmatprep.subr.mxu0 0.0
    %1916 = vmatpush1.msra.mxu0 0.0
    %1917 = vmatprep.subr.mxu0 0.0
    %1918 = vmatpush1.msra.mxu0 0.0
    %1919 = vmatprep.subr.mxu0 0.0
    %1920 = vmatpush1.msra.mxu0 0.0
    %1921 = vmatprep.subr.mxu0 0.0
    %1922 = vmatpush1.msra.mxu0 0.0
    %1923 = vmatprep.subr.mxu0 0.0
    %1924 = vmatpush1.msra.mxu0 0.0
    %1925 = vmatprep.subr.mxu0 0.0
    %1926 = vmatpush1.msra.mxu0 0.0
    %1927 = vmatprep.subr.mxu0 0.0
    %1928 = vmatpush1.msra.mxu0 %v1899
    %1929 = vmatprep.subr.mxu0 0.0
    %1930 = vmatpush1.msra.mxu0 %v1898
    %1931 = vmatprep.subr.mxu0 0.0
    %1932 = vmatpush1.msra.mxu0 %v1897
    %1933 = vmatprep.subr.mxu0 0.0
    %1934 = vmatpush1.msra.mxu0 %v1896
    %1935 = vmatprep.subr.mxu0 0.0
    %1936 = vmatpush1.msra.mxu0 %v1895
    %1937 = vmatprep.subr.mxu0 0.0
    %1938 = vmatpush1.msra.mxu0 %v1894
    %1939 = vmatprep.subr.mxu0 0.0
    %1940 = vmatpush1.msra.mxu0 %v1893
    %1941 = vmatprep.subr.mxu0 0.0
    %1942 = vmatpush1.msra.mxu0 %v1892
    %1943 = vmatprep.subr.mxu0 0.0
    %1944 = vmatpush2.msra.mxu0 0.0
    %1945 = vmatprep.subr.mxu0 0.0
    %1946 = vmatpush2.msra.mxu0 0.0
    %1947 = vmatprep.subr.mxu0 0.0
    %1948 = vmatpush2.msra.mxu0 0.0
    %1949 = vmatprep.subr.mxu0 0.0
    %1950 = vmatpush2.msra.mxu0 0.0
    %1951 = vmatprep.subr.mxu0 0.0
    %1952 = vmatpush2.msra.mxu0 0.0
    %1953 = vmatprep.subr.mxu0 0.0
    %1954 = vmatpush2.msra.mxu0 0.0
    %1955 = vmatprep.subr.mxu0 0.0
    %1956 = vmatpush2.msra.mxu0 0.0
    %1957 = vmatprep.subr.mxu0 0.0
    %1958 = vmatpush2.msra.mxu0 0.0
    %1959 = vmatprep.subr.mxu0 0.0
    %1960 = vmatpush2.msra.mxu0 0.0
    %1961 = vmatprep.subr.mxu0 0.0
    %1962 = vmatpush2.msra.mxu0 0.0
    %1963 = vmatprep.subr.mxu0 0.0
    %1964 = vmatpush2.msra.mxu0 0.0
    %1965 = vmatprep.subr.mxu0 0.0
    %1966 = vmatpush2.msra.mxu0 0.0
    %1967 = vmatprep.subr.mxu0 0.0
    %1968 = vmatpush2.msra.mxu0 0.0
    %1969 = vmatprep.subr.mxu0 0.0
    %1970 = vmatpush2.msra.mxu0 0.0
    %1971 = vmatprep.subr.mxu0 0.0
    %1972 = vmatpush2.msra.mxu0 0.0
    %1973 = vmatprep.subr.mxu0 0.0
    %1974 = vmatpush2.msra.mxu0 0.0
    %1975 = vmatprep.mubr.f32.mxu0 0.0
    %1976 = vmatmul.mubr.f32.gmra.mxu0 %v1909
    %v1977 = vpop.f32.mrf.mxu0
    %v1978 = vadd.f32 %v1905, %v1977
    %v1979 = vpop.f32.mrf.mxu0
    %1980 = vdwg.mxu0
    %v1981 = vmax.f32 %v1978, 0.0
    %1982 = vst.msk [vmem:[#allocation7] sm:$0xff] %vm104, %v1981
    // Predicated region
    $region58: #{tpu_custom_call.1} parent=1 // pred_check
      _
    $region59: #{tpu_custom_call.1} parent=1 // pred_check_branch
      %1984 = sbr.rel (0) target = $region61
    $region60: #{tpu_custom_call.1} parent=1 // pred_region
      %s1986 = ssub.s32 128, 128
      %1987 = vsyncadd [#allocation4], %s1986
      %s1989 = sshll.u32 [#allocation7], 4
      %s1990 = int_to_ptr.vmem [resolvable:$true] %s1989
      %1992 = dma.vmem_to_hbm [thread:$0]  %s1990, 128, %s12, [#allocation4]
    $region61: #{tpu_custom_call.1} parent=1 // pred_fallthru
      _
    // Predicated region
    $region62: #{tpu_custom_call.1} parent=1 // pred_check
      _
    $region63: #{tpu_custom_call.1} parent=1 // pred_check_branch
      %1994 = sbr.rel (0) target = $region65
    $region64: #{tpu_custom_call.1} parent=1 // pred_region
      %s1996 = ssub.s32 256, 256
      %1997 = vsyncadd [#allocation9], %s1996
      %s1998 = sshll.u32 [#allocation8], 4
      %s1999 = int_to_ptr.vmem [resolvable:$true] %s1998
      %2004 = dma.vmem_to_hbm [thread:$0]  %s1999, 256, %s13, [#allocation9], 128, 128, 8
    $region65: #{tpu_custom_call.1} parent=1 // pred_fallthru
      _
    // Predicated region
    $region66: #{tpu_custom_call.1} parent=1 // pred_check
      _
    $region67: #{tpu_custom_call.1} parent=1 // pred_check_branch
      %2006 = sbr.rel (0) target = $region69
    $region68: #{tpu_custom_call.1} parent=1 // pred_region
      %2007 = dma.done [#allocation4], 128
    $region69: #{tpu_custom_call.1} parent=1 // pred_fallthru
      _
    // Predicated region
    $region70: #{tpu_custom_call.1} parent=1 // pred_check
      _
    $region71: #{tpu_custom_call.1} parent=1 // pred_check_branch
      %2009 = sbr.rel (0) target = $region73
    $region72: #{tpu_custom_call.1} parent=1 // pred_region
      %2010 = dma.done [#allocation9], 256
    $region73: #{tpu_custom_call.1} parent=1 // pred_fallthru
      _
    %2011 = vsyncpa [#allocation3], 1
    %2012 = vsyncpa [#allocation6], 1
    %2013 = vsyncpa [#allocation4], 1
    %2014 = vsyncpa [#allocation9], 1

</llo_original>
